<compile_context>
chip_gen: v7x
topology: tpu7x:2x2x1
jax: 0.10.0
libtpu: 0.0.40
codegen_flags: <defaults>
</compile_context>

<pallas_src>
import functools

import jax
import jax.numpy as jnp
from jax.experimental import pallas as pl
from jax.experimental.pallas import tpu as pltpu


def _round_up(x, m):
    return (x + m - 1) // m * m


def _lpm_kernel(matmul_dtype,
                x_ref,
                w1_ref, b1_ref,
                w2_ref, b2_ref,
                w3_ref, b3_ref,
                w4_ref, b4_ref,
                w5_ref, b5_ref,
                o_ref):
    cd = matmul_dtype
    # Feature-major: batch lives on the lane axis for the whole pipeline.
    x = x_ref[...].astype(cd)                                   # (TILE_B, C)
    # Layer 1: contract x's feature axis -> (C, TILE_B); no x transpose needed.
    h = jax.lax.dot_general(
        w1_ref[...], x, (((1,), (1,)), ((), ())),
        preferred_element_type=jnp.float32)
    h = jax.nn.sigmoid(h + b1_ref[...]).astype(cd)              # (C,    TILE_B)
    h = jax.nn.sigmoid(
        jnp.dot(w2_ref[...], h, preferred_element_type=jnp.float32)
        + b2_ref[...]).astype(cd)                               # (2C,   TILE_B)
    h = jax.nn.sigmoid(
        jnp.dot(w3_ref[...], h, preferred_element_type=jnp.float32)
        + b3_ref[...]).astype(cd)                               # (C//2, TILE_B)
    h = jax.nn.sigmoid(
        jnp.dot(w4_ref[...], h, preferred_element_type=jnp.float32)
        + b4_ref[...]).astype(cd)                               # (C//4, TILE_B)
    out = (jnp.dot(w5_ref[...], h, preferred_element_type=jnp.float32)
           + b5_ref[...])                                       # (1,    TILE_B)
    o_ref[...] = out.astype(o_ref.dtype)


def lpm_forward(x, params, *, tile_b=4096, matmul_dtype=jnp.bfloat16):
    """LPM forward pass.

    x:      (B, C) float32 or bfloat16.
    params: 5 pairs (w, b) in PyTorch Linear layout: w (out, in), b (out,).
    matmul_dtype: MXU operand dtype (bf16 fast path, f32 exact path);
                  accumulation is always f32.
    Returns (B, 1) float32.
    """
    B, C = x.shape

    # Tile policy: big lane-friendly tiles to amortize grid-step overhead, but
    # capped so there are >=2 grid steps whenever possible (v7x megacore).
    half_b = _round_up(pl.cdiv(B, 2), 128)
    tile_b = max(128, min(tile_b, half_b))
    num_tiles = pl.cdiv(B, tile_b)
    padded_b = num_tiles * tile_b

    # Flatten params: w kept in (out, in) layout, cast to the matmul dtype;
    # biases reshaped to (out, 1) so they broadcast along the lane (batch) axis
    # and stay f32 (added to the f32 accumulators).
    flat = []
    for w, b in params:
        flat.append(jnp.asarray(w, matmul_dtype))
        flat.append(jnp.asarray(b, jnp.float32).reshape(-1, 1))

    # Constant index maps -> weights/biases DMA'd once, VMEM-resident.
    weight_specs = [pl.BlockSpec(a.shape, lambda i: (0, 0)) for a in flat]

    c2, c_half, c_quarter = 2 * C, C // 2, C // 4
    flops = 2 * B * (C * C + C * c2 + c2 * c_half + c_half * c_quarter
                     + c_quarter * 1)
    transcendentals = B * (C + c2 + c_half + c_quarter)
    bytes_accessed = (int(x.size) * x.dtype.itemsize
                      + sum(int(a.size) * a.dtype.itemsize for a in flat)
                      + padded_b * 4)

    kernel = functools.partial(_lpm_kernel, matmul_dtype)

    out = pl.pallas_call(
        kernel,
        grid=(num_tiles,),
        out_shape=jax.ShapeDtypeStruct((1, padded_b), jnp.float32),
        in_specs=[pl.BlockSpec((tile_b, C), lambda i: (i, 0))] + weight_specs,
        out_specs=pl.BlockSpec((1, tile_b), lambda i: (0, i)),
        compiler_params=pltpu.CompilerParams(
            dimension_semantics=("parallel",)),
        cost_estimate=pl.CostEstimate(
            flops=flops, transcendentals=transcendentals,
            bytes_accessed=bytes_accessed),
    )(x, *flat)

    return out[0, :B].reshape(B, 1)


def init_params(key, in_channel):
    """PyTorch-style init: w (out, in), b (out,), U(-1/sqrt(fan_in), +...)."""
    dims = [in_channel, in_channel, in_channel * 2, in_channel // 2,
            in_channel // 4, 1]
    params = []
    for i in range(5):
        key, kw, kb = jax.random.split(key, 3)
        fan_in, fan_out = dims[i], dims[i + 1]
        bound = 1.0 / (fan_in ** 0.5)
        w = jax.random.uniform(kw, (fan_out, fan_in), jnp.float32, -bound, bound)
        b = jax.random.uniform(kb, (fan_out,), jnp.float32, -bound, bound)
        params.append((w, b))
    return params


def lpm_reference(x, params):
    h = x.astype(jnp.float32)
    for i, (w, b) in enumerate(params):
        h = h @ w.T + b
        if i < 4:
            h = jax.nn.sigmoid(h)
    return h


if __name__ == "__main__":
    key = jax.random.PRNGKey(0)
    k_x, k_p = jax.random.split(key)

    batch, in_channel = 2000, 32          # 2 batch tiles of 1024 (ragged last)
    x = jax.random.normal(k_x, (batch, in_channel), jnp.float32)
    params = init_params(k_p, in_channel)

    ref = lpm_reference(x, params)

    # Fast path: bf16 MXU operands, f32 accumulation (relaxed tolerance).
    out = jax.block_until_ready(lpm_forward(x, params))
    assert out.shape == (batch, 1), out.shape
    assert jnp.allclose(out, ref, atol=5e-2, rtol=5e-2), (
        float(jnp.max(jnp.abs(out - ref))))

    # Exact path: f32 matmuls match the PyTorch module's f32 semantics.
    out_f32 = jax.block_until_ready(
        lpm_forward(x, params, matmul_dtype=jnp.float32))
    assert jnp.allclose(out_f32, ref, atol=1e-5, rtol=1e-5), (
        float(jnp.max(jnp.abs(out_f32 - ref))))

    # bf16 x in HBM (halves input DMA bytes) + small ragged batch.
    x_small = x[:200].astype(jnp.bfloat16)
    out_small = jax.block_until_ready(lpm_forward(x_small, params))
    ref_small = lpm_reference(x_small.astype(jnp.float32), params)
    assert out_small.shape == (200, 1), out_small.shape
    assert jnp.allclose(out_small, ref_small, atol=5e-2, rtol=5e-2), (
        float(jnp.max(jnp.abs(out_small - ref_small))))

    print("KERNEL_OK")
</pallas_src>

<mosaic_0001>
module attributes {stable_mosaic.version = 11 : i64} {
  func.func @_lpm_kernel(%arg0: i32, %arg1: memref<1024x32xf32, #tpu.memory_space<vmem>>, %arg2: memref<32x32xbf16, #tpu.memory_space<vmem>>, %arg3: memref<32x1xf32, #tpu.memory_space<vmem>>, %arg4: memref<64x32xbf16, #tpu.memory_space<vmem>>, %arg5: memref<64x1xf32, #tpu.memory_space<vmem>>, %arg6: memref<16x64xbf16, #tpu.memory_space<vmem>>, %arg7: memref<16x1xf32, #tpu.memory_space<vmem>>, %arg8: memref<8x16xbf16, #tpu.memory_space<vmem>>, %arg9: memref<8x1xf32, #tpu.memory_space<vmem>>, %arg10: memref<1x8xbf16, #tpu.memory_space<vmem>>, %arg11: memref<1x1xf32, #tpu.memory_space<vmem>>, %arg12: memref<1x1024xf32, #tpu.memory_space<vmem>>) attributes {dimension_semantics = [#tpu.dimension_semantics<parallel>], iteration_bounds = array<i64: 2>, scalar_prefetch = 0 : i64, scratch_operands = 0 : i64, tpu.core_type = #tpu.core_type<tc>, window_params = [{transform_indices = @transform_0, window_bounds = array<i64: 1024, 32>}, {pipeline_mode = #tpu.pipeline_mode<synchronous>, transform_indices = @transform_1, window_bounds = array<i64: 32, 32>}, {pipeline_mode = #tpu.pipeline_mode<synchronous>, transform_indices = @transform_2, window_bounds = array<i64: 32, 1>}, {pipeline_mode = #tpu.pipeline_mode<synchronous>, transform_indices = @transform_3, window_bounds = array<i64: 64, 32>}, {pipeline_mode = #tpu.pipeline_mode<synchronous>, transform_indices = @transform_4, window_bounds = array<i64: 64, 1>}, {pipeline_mode = #tpu.pipeline_mode<synchronous>, transform_indices = @transform_5, window_bounds = array<i64: 16, 64>}, {pipeline_mode = #tpu.pipeline_mode<synchronous>, transform_indices = @transform_6, window_bounds = array<i64: 16, 1>}, {pipeline_mode = #tpu.pipeline_mode<synchronous>, transform_indices = @transform_7, window_bounds = array<i64: 8, 16>}, {pipeline_mode = #tpu.pipeline_mode<synchronous>, transform_indices = @transform_8, window_bounds = array<i64: 8, 1>}, {pipeline_mode = #tpu.pipeline_mode<synchronous>, transform_indices = @transform_9, window_bounds = array<i64: 1, 8>}, {pipeline_mode = #tpu.pipeline_mode<synchronous>, transform_indices = @transform_10, window_bounds = array<i64: 1, 1>}, {transform_indices = @transform_11, window_bounds = array<i64: 1, 1024>}]} {
    %c0 = arith.constant 0 : index
    %c0_0 = arith.constant 0 : index
    %0 = vector.load %arg1[%c0, %c0_0] : memref<1024x32xf32, #tpu.memory_space<vmem>>, vector<1024x32xf32>
    %1 = arith.truncf %0 : vector<1024x32xf32> to vector<1024x32xbf16>
    %c0_1 = arith.constant 0 : index
    %c0_2 = arith.constant 0 : index
    %2 = vector.load %arg2[%c0_1, %c0_2] : memref<32x32xbf16, #tpu.memory_space<vmem>>, vector<32x32xbf16>
    %cst = arith.constant dense<0.000000e+00> : vector<32x1024xf32>
    %3 = tpu.matmul %2, %1, %cst {dimension_numbers = #tpu.dot_dimension_numbers<[1], [1], [0], [0], [0, 0, 1, 0], [], []>} : vector<32x32xbf16>, vector<1024x32xbf16>, vector<32x1024xf32> -> vector<32x1024xf32>
    %c0_3 = arith.constant 0 : index
    %c0_4 = arith.constant 0 : index
    %4 = vector.load %arg3[%c0_3, %c0_4] : memref<32x1xf32, #tpu.memory_space<vmem>>, vector<32x1xf32>
    %5 = vector.broadcast %4 : vector<32x1xf32> to vector<32x1024xf32>
    %6 = arith.addf %3, %5 : vector<32x1024xf32>
    %7 = arith.negf %6 : vector<32x1024xf32>
    %8 = math.exp %7 : vector<32x1024xf32>
    %cst_5 = arith.constant 1.000000e+00 : f32
    %9 = vector.broadcast %cst_5 : f32 to vector<32x1024xf32>
    %10 = arith.addf %9, %8 : vector<32x1024xf32>
    %11 = arith.divf %9, %10 : vector<32x1024xf32>
    %12 = arith.truncf %11 : vector<32x1024xf32> to vector<32x1024xbf16>
    %c0_6 = arith.constant 0 : index
    %c0_7 = arith.constant 0 : index
    %13 = vector.load %arg4[%c0_6, %c0_7] : memref<64x32xbf16, #tpu.memory_space<vmem>>, vector<64x32xbf16>
    %cst_8 = arith.constant dense<0.000000e+00> : vector<64x1024xf32>
    %14 = tpu.matmul %13, %12, %cst_8 {dimension_numbers = #tpu.dot_dimension_numbers<[1], [0], [0], [1], [0, 0, 1, 1], [], []>} : vector<64x32xbf16>, vector<32x1024xbf16>, vector<64x1024xf32> -> vector<64x1024xf32>
    %c0_9 = arith.constant 0 : index
    %c0_10 = arith.constant 0 : index
    %15 = vector.load %arg5[%c0_9, %c0_10] : memref<64x1xf32, #tpu.memory_space<vmem>>, vector<64x1xf32>
    %16 = vector.broadcast %15 : vector<64x1xf32> to vector<64x1024xf32>
    %17 = arith.addf %14, %16 : vector<64x1024xf32>
    %18 = arith.negf %17 : vector<64x1024xf32>
    %19 = math.exp %18 : vector<64x1024xf32>
    %cst_11 = arith.constant 1.000000e+00 : f32
    %20 = vector.broadcast %cst_11 : f32 to vector<64x1024xf32>
    %21 = arith.addf %20, %19 : vector<64x1024xf32>
    %22 = arith.divf %20, %21 : vector<64x1024xf32>
    %23 = arith.truncf %22 : vector<64x1024xf32> to vector<64x1024xbf16>
    %c0_12 = arith.constant 0 : index
    %c0_13 = arith.constant 0 : index
    %24 = vector.load %arg6[%c0_12, %c0_13] : memref<16x64xbf16, #tpu.memory_space<vmem>>, vector<16x64xbf16>
    %cst_14 = arith.constant dense<0.000000e+00> : vector<16x1024xf32>
    %25 = tpu.matmul %24, %23, %cst_14 {dimension_numbers = #tpu.dot_dimension_numbers<[1], [0], [0], [1], [0, 0, 1, 1], [], []>} : vector<16x64xbf16>, vector<64x1024xbf16>, vector<16x1024xf32> -> vector<16x1024xf32>
    %c0_15 = arith.constant 0 : index
    %c0_16 = arith.constant 0 : index
    %26 = vector.load %arg7[%c0_15, %c0_16] : memref<16x1xf32, #tpu.memory_space<vmem>>, vector<16x1xf32>
    %27 = vector.broadcast %26 : vector<16x1xf32> to vector<16x1024xf32>
    %28 = arith.addf %25, %27 : vector<16x1024xf32>
    %29 = arith.negf %28 : vector<16x1024xf32>
    %30 = math.exp %29 : vector<16x1024xf32>
    %cst_17 = arith.constant 1.000000e+00 : f32
    %31 = vector.broadcast %cst_17 : f32 to vector<16x1024xf32>
    %32 = arith.addf %31, %30 : vector<16x1024xf32>
    %33 = arith.divf %31, %32 : vector<16x1024xf32>
    %34 = arith.truncf %33 : vector<16x1024xf32> to vector<16x1024xbf16>
    %c0_18 = arith.constant 0 : index
    %c0_19 = arith.constant 0 : index
    %35 = vector.load %arg8[%c0_18, %c0_19] : memref<8x16xbf16, #tpu.memory_space<vmem>>, vector<8x16xbf16>
    %cst_20 = arith.constant dense<0.000000e+00> : vector<8x1024xf32>
    %36 = tpu.matmul %35, %34, %cst_20 {dimension_numbers = #tpu.dot_dimension_numbers<[1], [0], [0], [1], [0, 0, 1, 1], [], []>} : vector<8x16xbf16>, vector<16x1024xbf16>, vector<8x1024xf32> -> vector<8x1024xf32>
    %c0_21 = arith.constant 0 : index
    %c0_22 = arith.constant 0 : index
    %37 = vector.load %arg9[%c0_21, %c0_22] : memref<8x1xf32, #tpu.memory_space<vmem>>, vector<8x1xf32>
    %38 = vector.broadcast %37 : vector<8x1xf32> to vector<8x1024xf32>
    %39 = arith.addf %36, %38 : vector<8x1024xf32>
    %40 = arith.negf %39 : vector<8x1024xf32>
    %41 = math.exp %40 : vector<8x1024xf32>
    %cst_23 = arith.constant 1.000000e+00 : f32
    %42 = vector.broadcast %cst_23 : f32 to vector<8x1024xf32>
    %43 = arith.addf %42, %41 : vector<8x1024xf32>
    %44 = arith.divf %42, %43 : vector<8x1024xf32>
    %45 = arith.truncf %44 : vector<8x1024xf32> to vector<8x1024xbf16>
    %c0_24 = arith.constant 0 : index
    %c0_25 = arith.constant 0 : index
    %46 = vector.load %arg10[%c0_24, %c0_25] : memref<1x8xbf16, #tpu.memory_space<vmem>>, vector<1x8xbf16>
    %cst_26 = arith.constant dense<0.000000e+00> : vector<1x1024xf32>
    %47 = tpu.matmul %46, %45, %cst_26 {dimension_numbers = #tpu.dot_dimension_numbers<[1], [0], [0], [1], [0, 0, 1, 1], [], []>} : vector<1x8xbf16>, vector<8x1024xbf16>, vector<1x1024xf32> -> vector<1x1024xf32>
    %c0_27 = arith.constant 0 : index
    %c0_28 = arith.constant 0 : index
    %48 = vector.load %arg11[%c0_27, %c0_28] : memref<1x1xf32, #tpu.memory_space<vmem>>, vector<1x1xf32>
    %49 = vector.broadcast %48 : vector<1x1xf32> to vector<1x1024xf32>
    %50 = arith.addf %47, %49 : vector<1x1024xf32>
    %c0_29 = arith.constant 0 : index
    %c0_30 = arith.constant 0 : index
    %51 = vector.load %arg12[%c0_29, %c0_30] : memref<1x1024xf32, #tpu.memory_space<vmem>>, vector<1x1024xf32>
    tpu.vector_store %arg12[%c0_29, %c0_30], %50 {strides = array<i32>} : memref<1x1024xf32, #tpu.memory_space<vmem>>, vector<1x1024xf32>,
    return
  }
  func.func @transform_0(%arg0: i32) -> (i32, i32) {
    %c0_i32 = arith.constant 0 : i32
    %c0_i32_0 = arith.constant 0 : i32
    return %arg0, %c0_i32 : i32, i32
  }
  func.func @transform_1(%arg0: i32) -> (i32, i32) {
    %c0_i32 = arith.constant 0 : i32
    %c0_i32_0 = arith.constant 0 : i32
    %c0_i32_1 = arith.constant 0 : i32
    return %c0_i32, %c0_i32_0 : i32, i32
  }
  func.func @transform_2(%arg0: i32) -> (i32, i32) {
    %c0_i32 = arith.constant 0 : i32
    %c0_i32_0 = arith.constant 0 : i32
    %c0_i32_1 = arith.constant 0 : i32
    return %c0_i32, %c0_i32_0 : i32, i32
  }
  func.func @transform_3(%arg0: i32) -> (i32, i32) {
    %c0_i32 = arith.constant 0 : i32
    %c0_i32_0 = arith.constant 0 : i32
    %c0_i32_1 = arith.constant 0 : i32
    return %c0_i32, %c0_i32_0 : i32, i32
  }
  func.func @transform_4(%arg0: i32) -> (i32, i32) {
    %c0_i32 = arith.constant 0 : i32
    %c0_i32_0 = arith.constant 0 : i32
    %c0_i32_1 = arith.constant 0 : i32
    return %c0_i32, %c0_i32_0 : i32, i32
  }
  func.func @transform_5(%arg0: i32) -> (i32, i32) {
    %c0_i32 = arith.constant 0 : i32
    %c0_i32_0 = arith.constant 0 : i32
    %c0_i32_1 = arith.constant 0 : i32
    return %c0_i32, %c0_i32_0 : i32, i32
  }
  func.func @transform_6(%arg0: i32) -> (i32, i32) {
    %c0_i32 = arith.constant 0 : i32
    %c0_i32_0 = arith.constant 0 : i32
    %c0_i32_1 = arith.constant 0 : i32
    return %c0_i32, %c0_i32_0 : i32, i32
  }
  func.func @transform_7(%arg0: i32) -> (i32, i32) {
    %c0_i32 = arith.constant 0 : i32
    %c0_i32_0 = arith.constant 0 : i32
    %c0_i32_1 = arith.constant 0 : i32
    return %c0_i32, %c0_i32_0 : i32, i32
  }
  func.func @transform_8(%arg0: i32) -> (i32, i32) {
    %c0_i32 = arith.constant 0 : i32
    %c0_i32_0 = arith.constant 0 : i32
    %c0_i32_1 = arith.constant 0 : i32
    return %c0_i32, %c0_i32_0 : i32, i32
  }
  func.func @transform_9(%arg0: i32) -> (i32, i32) {
    %c0_i32 = arith.constant 0 : i32
    %c0_i32_0 = arith.constant 0 : i32
    %c0_i32_1 = arith.constant 0 : i32
    return %c0_i32, %c0_i32_0 : i32, i32
  }
  func.func @transform_10(%arg0: i32) -> (i32, i32) {
    %c0_i32 = arith.constant 0 : i32
    %c0_i32_0 = arith.constant 0 : i32
    %c0_i32_1 = arith.constant 0 : i32
    return %c0_i32, %c0_i32_0 : i32, i32
  }
  func.func @transform_11(%arg0: i32) -> (i32, i32) {
    %c0_i32 = arith.constant 0 : i32
    %c0_i32_0 = arith.constant 0 : i32
    return %c0_i32, %arg0 : i32, i32
  }
}

</mosaic_0001>

<llo_original>
// kernel: tpu_custom_call.1
$region0: #{tpu_custom_call.1}
  #allocation0 [shape = 'u32[]', space=smem, size = 0x4, offset = 0x4, fixed_abs, tag = 'smem constant byte address 0x4 - core index']
  #allocation1 [shape = 'u32[144,128]{1,0:T(1,128)}', space=vmem, size = 0x12000, scoped, tag = 'internal scratch']
  #allocation2 [shape = 'f32[1,1]{1,0:T(1,128)S(1)}', space=vmem, size = 0x200, scoped, tag = 'scoped memory for tpu_custom_call.1']
  %s0 = inlined_call_operand.vmem [shape: f32[2000,32], index: 0, kind: input, shape index: {}]
  %s1 = inlined_call_operand.vmem [shape: bf16[32,32], index: 1, kind: input, shape index: {}]
  %s2 = inlined_call_operand.vmem [shape: f32[32,1], index: 2, kind: input, shape index: {}]
  %s3 = inlined_call_operand.vmem [shape: bf16[64,32], index: 3, kind: input, shape index: {}]
  %s4 = inlined_call_operand.vmem [shape: f32[64,1], index: 4, kind: input, shape index: {}]
  %s5 = inlined_call_operand.vmem [shape: bf16[16,64], index: 5, kind: input, shape index: {}]
  %s6 = inlined_call_operand.vmem [shape: f32[16,1], index: 6, kind: input, shape index: {}]
  %s7 = inlined_call_operand.vmem [shape: bf16[8,16], index: 7, kind: input, shape index: {}]
  %s8 = inlined_call_operand.vmem [shape: f32[8,1], index: 8, kind: input, shape index: {}]
  %s9 = inlined_call_operand.vmem [shape: bf16[1,8], index: 9, kind: input, shape index: {}]
  %s10 = inlined_call_operand.<no memory space> [shape: f32[1,1], index: 10, kind: input, shape index: {}]
  %s11 = inlined_call_operand.hbm [shape: f32[1,2048], index: 11, kind: output, shape index: {}]
  %s12 = sld [smem:[#allocation0]]
  $region77: #{tpu_custom_call.1} parent=0
    _
  %s14 = ssub.s32 1, %s12
  %s15 = scalar_select 0, %s14, %s12
  %v16 = vstv %s10
  %17 = vst [vmem:[#allocation2] sm:$0x1] %v16
  $region1: #{tpu_custom_call.1} parent=0
    #allocation3 [shape = 'u8[8192]{0}', space=vmem, size = 0x2000, scoped, tag = 'output window, operand 0']
    #allocation4 [shape = 's32[2]{0}', space=sflag, size = 0x8, scoped, tag = 'scoped memory for tpu_custom_call.1']
    %18 = vsyncpa [#allocation4], 0
    %s19 = scalar_lea.sflag [#allocation4], 1
    %20 = vsyncpa %s19, 0
    loop: start=0, step=1, limit=4
    $region2: #{tpu_custom_call.1} parent=1 // loop_pre_header
      _
    $region3: #{tpu_custom_call.1} parent=1 // loop_header
      %s22 = sphi 0, %s26
      %p23 = scmp.ge.s32.totalorder %s22, 4
      %s32 = sphi 0, %s34
      %s35 = sphi 0, %s32
      %s36 = sphi 0, %s35
      %s52 = sphi 0, %s36
      %s56 = sphi 0, %s56
      %s58 = sphi 0, %s56
      %s59 = sphi 0, %s58
      %s73 = sphi 0, %s59
      %s77 = sphi 0, %s77
      %s79 = sphi 0, %s77
      %s80 = sphi 0, %s79
      %s94 = sphi 0, %s80
      %s98 = sphi 0, %s98
      %s100 = sphi 0, %s98
      %s101 = sphi 0, %s100
      %s115 = sphi 0, %s101
      %s119 = sphi 0, %s119
      %s121 = sphi 0, %s119
      %s122 = sphi 0, %s121
      %s136 = sphi 0, %s122
      %s140 = sphi 0, %s140
      %s142 = sphi 0, %s140
      %s143 = sphi 0, %s142
      %s157 = sphi 0, %s143
      %s161 = sphi 0, %s161
      %s163 = sphi 0, %s161
      %s164 = sphi 0, %s163
      %s178 = sphi 0, %s164
      %s182 = sphi 0, %s182
      %s184 = sphi 0, %s182
      %s185 = sphi 0, %s184
      %s199 = sphi 0, %s185
      %s203 = sphi 0, %s203
      %s205 = sphi 0, %s203
      %s206 = sphi 0, %s205
      %s220 = sphi 0, %s206
      %s224 = sphi 0, %s224
      %s226 = sphi 0, %s224
      %s227 = sphi 0, %s226
      %s241 = sphi 0, %s227
      %s245 = sphi 0, %s245
      %s247 = sphi 0, %s245
      %s248 = sphi 0, %s247
      %s262 = sphi 0, %s248
      %s268 = sphi 0, %s270
      %s271 = sphi 0, %s268
      %s272 = sphi 0, %s271
      %s288 = sphi 0, %s272
    $region4: #{tpu_custom_call.1} parent=1 // loop_header_branch
      %25 = sbr.rel (%p23) target = $region8
    $region5: #{tpu_custom_call.1} parent=1 // loop_body
      %s27 = ssub.s32 %s22, 1
      %s28 = ssub.s32 %s22, 2
      %s29 = sadd.s32 %s22, 1
      %s30 = ssub.s32 %s22, %s29
      %p31 = scmp.eq.s32.totalorder %s30, 0
      %s33 = sadd.s32 %s32, 1
      %s34 = scalar_select %p31, %s32, %s33
      %p37 = pneg %p31
      %p38 = scmp.eq.s32.totalorder %s22, 1
      %p39 = por %p37, %p38
      %p40 = scmp.ne.s32.totalorder %s32, %s35
      %p41 = scmp.eq.s32.totalorder %s22, 0
      %p42 = por %p40, %p41
      %p43 = scmp.ne.s32.totalorder %s32, %s35
      %p44 = scmp.eq.s32.totalorder %s27, 1
      %p45 = por %p43, %p44
      %p46 = scmp.ne.s32.totalorder %s35, %s36
      %p47 = scmp.eq.s32.totalorder %s27, 0
      %p48 = por %p46, %p47
      %p49 = scmp.ne.s32.totalorder %s35, %s36
      %p50 = scmp.eq.s32.totalorder %s28, 1
      %p51 = por %p49, %p50
      %p53 = scmp.ne.s32.totalorder %s36, %s52
      %p54 = scmp.eq.s32.totalorder %s28, 0
      %p55 = por %p53, %p54
      %s57 = sadd.s32 %s56, 1
      %p60 = scmp.eq.s32.totalorder %s22, 1
      %p61 = scmp.ne.s32.totalorder %s56, %s58
      %p62 = scmp.eq.s32.totalorder %s22, 0
      %p63 = por %p61, %p62
      %p64 = scmp.ne.s32.totalorder %s56, %s58
      %p65 = scmp.eq.s32.totalorder %s27, 1
      %p66 = por %p64, %p65
      %p67 = scmp.ne.s32.totalorder %s58, %s59
      %p68 = scmp.eq.s32.totalorder %s27, 0
      %p69 = por %p67, %p68
      %p70 = scmp.ne.s32.totalorder %s58, %s59
      %p71 = scmp.eq.s32.totalorder %s28, 1
      %p72 = por %p70, %p71
      %p74 = scmp.ne.s32.totalorder %s59, %s73
      %p75 = scmp.eq.s32.totalorder %s28, 0
      %p76 = por %p74, %p75
      %s78 = sadd.s32 %s77, 1
      %p81 = scmp.eq.s32.totalorder %s22, 1
      %p82 = scmp.ne.s32.totalorder %s77, %s79
      %p83 = scmp.eq.s32.totalorder %s22, 0
      %p84 = por %p82, %p83
      %p85 = scmp.ne.s32.totalorder %s77, %s79
      %p86 = scmp.eq.s32.totalorder %s27, 1
      %p87 = por %p85, %p86
      %p88 = scmp.ne.s32.totalorder %s79, %s80
      %p89 = scmp.eq.s32.totalorder %s27, 0
      %p90 = por %p88, %p89
      %p91 = scmp.ne.s32.totalorder %s79, %s80
      %p92 = scmp.eq.s32.totalorder %s28, 1
      %p93 = por %p91, %p92
      %p95 = scmp.ne.s32.totalorder %s80, %s94
      %p96 = scmp.eq.s32.totalorder %s28, 0
      %p97 = por %p95, %p96
      %s99 = sadd.s32 %s98, 1
      %p102 = scmp.eq.s32.totalorder %s22, 1
      %p103 = scmp.ne.s32.totalorder %s98, %s100
      %p104 = scmp.eq.s32.totalorder %s22, 0
      %p105 = por %p103, %p104
      %p106 = scmp.ne.s32.totalorder %s98, %s100
      %p107 = scmp.eq.s32.totalorder %s27, 1
      %p108 = por %p106, %p107
      %p109 = scmp.ne.s32.totalorder %s100, %s101
      %p110 = scmp.eq.s32.totalorder %s27, 0
      %p111 = por %p109, %p110
      %p112 = scmp.ne.s32.totalorder %s100, %s101
      %p113 = scmp.eq.s32.totalorder %s28, 1
      %p114 = por %p112, %p113
      %p116 = scmp.ne.s32.totalorder %s101, %s115
      %p117 = scmp.eq.s32.totalorder %s28, 0
      %p118 = por %p116, %p117
      %s120 = sadd.s32 %s119, 1
      %p123 = scmp.eq.s32.totalorder %s22, 1
      %p124 = scmp.ne.s32.totalorder %s119, %s121
      %p125 = scmp.eq.s32.totalorder %s22, 0
      %p126 = por %p124, %p125
      %p127 = scmp.ne.s32.totalorder %s119, %s121
      %p128 = scmp.eq.s32.totalorder %s27, 1
      %p129 = por %p127, %p128
      %p130 = scmp.ne.s32.totalorder %s121, %s122
      %p131 = scmp.eq.s32.totalorder %s27, 0
      %p132 = por %p130, %p131
      %p133 = scmp.ne.s32.totalorder %s121, %s122
      %p134 = scmp.eq.s32.totalorder %s28, 1
      %p135 = por %p133, %p134
      %p137 = scmp.ne.s32.totalorder %s122, %s136
      %p138 = scmp.eq.s32.totalorder %s28, 0
      %p139 = por %p137, %p138
      %s141 = sadd.s32 %s140, 1
      %p144 = scmp.eq.s32.totalorder %s22, 1
      %p145 = scmp.ne.s32.totalorder %s140, %s142
      %p146 = scmp.eq.s32.totalorder %s22, 0
      %p147 = por %p145, %p146
      %p148 = scmp.ne.s32.totalorder %s140, %s142
      %p149 = scmp.eq.s32.totalorder %s27, 1
      %p150 = por %p148, %p149
      %p151 = scmp.ne.s32.totalorder %s142, %s143
      %p152 = scmp.eq.s32.totalorder %s27, 0
      %p153 = por %p151, %p152
      %p154 = scmp.ne.s32.totalorder %s142, %s143
      %p155 = scmp.eq.s32.totalorder %s28, 1
      %p156 = por %p154, %p155
      %p158 = scmp.ne.s32.totalorder %s143, %s157
      %p159 = scmp.eq.s32.totalorder %s28, 0
      %p160 = por %p158, %p159
      %s162 = sadd.s32 %s161, 1
      %p165 = scmp.eq.s32.totalorder %s22, 1
      %p166 = scmp.ne.s32.totalorder %s161, %s163
      %p167 = scmp.eq.s32.totalorder %s22, 0
      %p168 = por %p166, %p167
      %p169 = scmp.ne.s32.totalorder %s161, %s163
      %p170 = scmp.eq.s32.totalorder %s27, 1
      %p171 = por %p169, %p170
      %p172 = scmp.ne.s32.totalorder %s163, %s164
      %p173 = scmp.eq.s32.totalorder %s27, 0
      %p174 = por %p172, %p173
      %p175 = scmp.ne.s32.totalorder %s163, %s164
      %p176 = scmp.eq.s32.totalorder %s28, 1
      %p177 = por %p175, %p176
      %p179 = scmp.ne.s32.totalorder %s164, %s178
      %p180 = scmp.eq.s32.totalorder %s28, 0
      %p181 = por %p179, %p180
      %s183 = sadd.s32 %s182, 1
      %p186 = scmp.eq.s32.totalorder %s22, 1
      %p187 = scmp.ne.s32.totalorder %s182, %s184
      %p188 = scmp.eq.s32.totalorder %s22, 0
      %p189 = por %p187, %p188
      %p190 = scmp.ne.s32.totalorder %s182, %s184
      %p191 = scmp.eq.s32.totalorder %s27, 1
      %p192 = por %p190, %p191
      %p193 = scmp.ne.s32.totalorder %s184, %s185
      %p194 = scmp.eq.s32.totalorder %s27, 0
      %p195 = por %p193, %p194
      %p196 = scmp.ne.s32.totalorder %s184, %s185
      %p197 = scmp.eq.s32.totalorder %s28, 1
      %p198 = por %p196, %p197
      %p200 = scmp.ne.s32.totalorder %s185, %s199
      %p201 = scmp.eq.s32.totalorder %s28, 0
      %p202 = por %p200, %p201
      %s204 = sadd.s32 %s203, 1
      %p207 = scmp.eq.s32.totalorder %s22, 1
      %p208 = scmp.ne.s32.totalorder %s203, %s205
      %p209 = scmp.eq.s32.totalorder %s22, 0
      %p210 = por %p208, %p209
      %p211 = scmp.ne.s32.totalorder %s203, %s205
      %p212 = scmp.eq.s32.totalorder %s27, 1
      %p213 = por %p211, %p212
      %p214 = scmp.ne.s32.totalorder %s205, %s206
      %p215 = scmp.eq.s32.totalorder %s27, 0
      %p216 = por %p214, %p215
      %p217 = scmp.ne.s32.totalorder %s205, %s206
      %p218 = scmp.eq.s32.totalorder %s28, 1
      %p219 = por %p217, %p218
      %p221 = scmp.ne.s32.totalorder %s206, %s220
      %p222 = scmp.eq.s32.totalorder %s28, 0
      %p223 = por %p221, %p222
      %s225 = sadd.s32 %s224, 1
      %p228 = scmp.eq.s32.totalorder %s22, 1
      %p229 = scmp.ne.s32.totalorder %s224, %s226
      %p230 = scmp.eq.s32.totalorder %s22, 0
      %p231 = por %p229, %p230
      %p232 = scmp.ne.s32.totalorder %s224, %s226
      %p233 = scmp.eq.s32.totalorder %s27, 1
      %p234 = por %p232, %p233
      %p235 = scmp.ne.s32.totalorder %s226, %s227
      %p236 = scmp.eq.s32.totalorder %s27, 0
      %p237 = por %p235, %p236
      %p238 = scmp.ne.s32.totalorder %s226, %s227
      %p239 = scmp.eq.s32.totalorder %s28, 1
      %p240 = por %p238, %p239
      %p242 = scmp.ne.s32.totalorder %s227, %s241
      %p243 = scmp.eq.s32.totalorder %s28, 0
      %p244 = por %p242, %p243
      %s246 = sadd.s32 %s245, 1
      %p249 = scmp.eq.s32.totalorder %s22, 1
      %p250 = scmp.ne.s32.totalorder %s245, %s247
      %p251 = scmp.eq.s32.totalorder %s22, 0
      %p252 = por %p250, %p251
      %p253 = scmp.ne.s32.totalorder %s245, %s247
      %p254 = scmp.eq.s32.totalorder %s27, 1
      %p255 = por %p253, %p254
      %p256 = scmp.ne.s32.totalorder %s247, %s248
      %p257 = scmp.eq.s32.totalorder %s27, 0
      %p258 = por %p256, %p257
      %p259 = scmp.ne.s32.totalorder %s247, %s248
      %p260 = scmp.eq.s32.totalorder %s28, 1
      %p261 = por %p259, %p260
      %p263 = scmp.ne.s32.totalorder %s248, %s262
      %p264 = scmp.eq.s32.totalorder %s28, 0
      %p265 = por %p263, %p264
      %s266 = ssub.s32 %s22, %s29
      %p267 = scmp.eq.s32.totalorder %s266, 0
      %s269 = sadd.s32 %s268, 1
      %s270 = scalar_select %p267, %s268, %s269
      %p273 = pneg %p267
      %p274 = scmp.eq.s32.totalorder %s22, 1
      %p275 = por %p273, %p274
      %p276 = scmp.ne.s32.totalorder %s268, %s271
      %p277 = scmp.eq.s32.totalorder %s22, 0
      %p278 = por %p276, %p277
      %p279 = scmp.ne.s32.totalorder %s268, %s271
      %p280 = scmp.eq.s32.totalorder %s27, 1
      %p281 = por %p279, %p280
      %p282 = scmp.ne.s32.totalorder %s271, %s272
      %p283 = scmp.eq.s32.totalorder %s27, 0
      %p284 = por %p282, %p283
      %p285 = scmp.ne.s32.totalorder %s271, %s272
      %p286 = scmp.eq.s32.totalorder %s28, 1
      %p287 = por %p285, %p286
      %p289 = scmp.ne.s32.totalorder %s272, %s288
      %p290 = scmp.eq.s32.totalorder %s28, 0
      %p291 = por %p289, %p290
      %p292 = scmp.le.s32.totalorder 1, %s22
      %p293 = scmp.lt.s32.totalorder %s22, 3
      %p294 = pnand %p292, %p293
      %p295 = pneg %p294
      // Predicated region
      $region9: #{tpu_custom_call.1} parent=5 // pred_check
        _
      $region10: #{tpu_custom_call.1} parent=5 // pred_check_branch
        %297 = sbr.rel (%p294) target = $region12
      $region11: #{tpu_custom_call.1} parent=5 // pred_region
        %s298 = ssub.s32 %s22, 1
        // Predicated region
        $region13: #{tpu_custom_call.1} parent=11 // pred_check
          %p299 = pneg %p69
        $region14: #{tpu_custom_call.1} parent=11 // pred_check_branch
          %301 = sbr.rel (%p299) target = $region16
        $region15: #{tpu_custom_call.1} parent=11 // pred_region
          _
        $region16: #{tpu_custom_call.1} parent=11 // pred_fallthru
          _
        // Predicated region
        $region17: #{tpu_custom_call.1} parent=11 // pred_check
          %p302 = pneg %p90
        $region18: #{tpu_custom_call.1} parent=11 // pred_check_branch
          %304 = sbr.rel (%p302) target = $region20
        $region19: #{tpu_custom_call.1} parent=11 // pred_region
          _
        $region20: #{tpu_custom_call.1} parent=11 // pred_fallthru
          _
        // Predicated region
        $region21: #{tpu_custom_call.1} parent=11 // pred_check
          %p305 = pneg %p111
        $region22: #{tpu_custom_call.1} parent=11 // pred_check_branch
          %307 = sbr.rel (%p305) target = $region24
        $region23: #{tpu_custom_call.1} parent=11 // pred_region
          _
        $region24: #{tpu_custom_call.1} parent=11 // pred_fallthru
          _
        // Predicated region
        $region25: #{tpu_custom_call.1} parent=11 // pred_check
          %p308 = pneg %p132
        $region26: #{tpu_custom_call.1} parent=11 // pred_check_branch
          %310 = sbr.rel (%p308) target = $region28
        $region27: #{tpu_custom_call.1} parent=11 // pred_region
          _
        $region28: #{tpu_custom_call.1} parent=11 // pred_fallthru
          _
        // Predicated region
        $region29: #{tpu_custom_call.1} parent=11 // pred_check
          %p311 = pneg %p153
        $region30: #{tpu_custom_call.1} parent=11 // pred_check_branch
          %313 = sbr.rel (%p311) target = $region32
        $region31: #{tpu_custom_call.1} parent=11 // pred_region
          _
        $region32: #{tpu_custom_call.1} parent=11 // pred_fallthru
          _
        // Predicated region
        $region33: #{tpu_custom_call.1} parent=11 // pred_check
          %p314 = pneg %p174
        $region34: #{tpu_custom_call.1} parent=11 // pred_check_branch
          %316 = sbr.rel (%p314) target = $region36
        $region35: #{tpu_custom_call.1} parent=11 // pred_region
          _
        $region36: #{tpu_custom_call.1} parent=11 // pred_fallthru
          _
        // Predicated region
        $region37: #{tpu_custom_call.1} parent=11 // pred_check
          %p317 = pneg %p195
        $region38: #{tpu_custom_call.1} parent=11 // pred_check_branch
          %319 = sbr.rel (%p317) target = $region40
        $region39: #{tpu_custom_call.1} parent=11 // pred_region
          _
        $region40: #{tpu_custom_call.1} parent=11 // pred_fallthru
          _
        // Predicated region
        $region41: #{tpu_custom_call.1} parent=11 // pred_check
          %p320 = pneg %p216
        $region42: #{tpu_custom_call.1} parent=11 // pred_check_branch
          %322 = sbr.rel (%p320) target = $region44
        $region43: #{tpu_custom_call.1} parent=11 // pred_region
          _
        $region44: #{tpu_custom_call.1} parent=11 // pred_fallthru
          _
        // Predicated region
        $region45: #{tpu_custom_call.1} parent=11 // pred_check
          %p323 = pneg %p237
        $region46: #{tpu_custom_call.1} parent=11 // pred_check_branch
          %325 = sbr.rel (%p323) target = $region48
        $region47: #{tpu_custom_call.1} parent=11 // pred_region
          _
        $region48: #{tpu_custom_call.1} parent=11 // pred_fallthru
          _
        // Predicated region
        $region49: #{tpu_custom_call.1} parent=11 // pred_check
          %p326 = pneg %p258
        $region50: #{tpu_custom_call.1} parent=11 // pred_check_branch
          %328 = sbr.rel (%p326) target = $region52
        $region51: #{tpu_custom_call.1} parent=11 // pred_region
          _
        $region52: #{tpu_custom_call.1} parent=11 // pred_fallthru
          _
      $region12: #{tpu_custom_call.1} parent=5 // pred_fallthru
        _
      %p329 = scmp.lt.s32.totalorder %s22, 2
      // Predicated region
      $region53: #{tpu_custom_call.1} parent=5 // pred_check
        %p330 = pneg %p329
      $region54: #{tpu_custom_call.1} parent=5 // pred_check_branch
        %332 = sbr.rel (%p330) target = $region56
      $region55: #{tpu_custom_call.1} parent=5 // pred_region
        // Predicated region
        $region57: #{tpu_custom_call.1} parent=55 // pred_check
          %p333 = pneg %p42
        $region58: #{tpu_custom_call.1} parent=55 // pred_check_branch
          %335 = sbr.rel (%p333) target = $region60
        $region59: #{tpu_custom_call.1} parent=55 // pred_region
          %s336 = smul.u32 128, %s22
          %s337 = ssub.s32 250, %s336
          %p338 = scmp.lt.s32.totalorder %s337, 128
          %s339 = scalar_select %p338, %s337, 128
          %s340 = smul.u32 128, %s339
          %p341 = scmp.lt.s32.totalorder %s336, 249
          %s342 = scalar_select %p341, %s336, 249
          %s343 = smul.addr %s342, 8
          %s344 = scalar_lea.vmem %s0, %s343
          %s345 = smul.u32 128, %s22
          %s346 = ssub.s32 250, %s345
          %p347 = scmp.lt.s32.totalorder %s346, 128
          %s348 = scalar_select %p347, %s346, 128
          %s349 = smul.u32 128, %s348
        $region60: #{tpu_custom_call.1} parent=55 // pred_fallthru
          _
      $region56: #{tpu_custom_call.1} parent=5 // pred_fallthru
        _
      %p350 = scmp.le.s32.totalorder 1, %s22
      %p351 = scmp.lt.s32.totalorder %s22, 3
      %p352 = pnand %p350, %p351
      %p353 = pneg %p352
      // Predicated region
      $region61: #{tpu_custom_call.1} parent=5 // pred_check
        _
      $region62: #{tpu_custom_call.1} parent=5 // pred_check_branch
        %355 = sbr.rel (%p352) target = $region64
      $region63: #{tpu_custom_call.1} parent=5 // pred_region
        %s356 = ssub.s32 %s22, 1
        %s357 = smul.u32 128, %s27
        %s358 = ssub.s32 250, %s357
        %p359 = scmp.lt.s32.totalorder %s358, 128
        %s360 = scalar_select %p359, %s358, 128
        %s361 = smul.u32 128, %s360
        %p362 = scmp.lt.s32.totalorder %s357, 249
        %s363 = scalar_select %p362, %s357, 249
        %s364 = smul.addr %s363, 8
        %s365 = scalar_lea.vmem %s0, %s364
        %p366 = pneg %p48
        %p367 = pneg %p45
        %p368 = pneg %p69
        %p369 = pneg %p66
        %p370 = pneg %p90
        %p371 = pneg %p87
        %p372 = pneg %p111
        %p373 = pneg %p108
        %p374 = pneg %p132
        %p375 = pneg %p129
        %p376 = pneg %p153
        %p377 = pneg %p150
        %p378 = pneg %p174
        %p379 = pneg %p171
        %p380 = pneg %p195
        %p381 = pneg %p192
        %p382 = pneg %p216
        %p383 = pneg %p213
        %p384 = pneg %p237
        %p385 = pneg %p234
        %p386 = pneg %p258
        %p387 = pneg %p255
        %p388 = pneg %p284
        %p389 = pneg %p281
        %s390 = sand.u32 %s271, 1
        %s391 = scalar_lea.sflag [#allocation4], %s390
        %s392 = sand.u32 %s271, 1
        %s393 = smul.addr %s392, 8
        %s394 = scalar_lea.vmem [#allocation3], %s393
        %s395 = smul.u32 128, %s27
        %s396 = ssub.s32 250, %s395
        %p397 = scmp.lt.s32.totalorder %s396, 128
        %s398 = scalar_select %p397, %s396, 128
        %s399 = smul.u32 128, %s398
        %p400 = scmp.lt.s32.totalorder %s395, 249
        %s401 = scalar_select %p400, %s395, 249
        %s402 = smul.addr %s401, 8
        %s403 = scalar_lea.vmem %s0, %s402
        %s404 = smul.u32 128, %s27
        %s405 = ssub.s32 250, %s404
        %p406 = scmp.lt.s32.totalorder %s405, 128
        %s407 = scalar_select %p406, %s405, 128
        %s408 = smul.u32 128, %s407
        %s409 = smul.u32 8, %s27
        %v411 = vld [vmem:[%s403] sm:$0xff]
        %v412 = vld [vmem:[%s403 + $0x8] sm:$0xff]
        %v413 = vld [vmem:[%s403 + $0x10] sm:$0xff]
        %v414 = vld [vmem:[%s403 + $0x18] sm:$0xff]
        %v415 = vld [vmem:[%s403 + $0x20] sm:$0xff]
        %v416 = vld [vmem:[%s403 + $0x28] sm:$0xff]
        %v417 = vld [vmem:[%s403 + $0x30] sm:$0xff]
        %v418 = vld [vmem:[%s403 + $0x38] sm:$0xff]
        %v419 = vld [vmem:[%s403 + $0x40] sm:$0xff]
        %v420 = vld [vmem:[%s403 + $0x48] sm:$0xff]
        %v421 = vld [vmem:[%s403 + $0x50] sm:$0xff]
        %v422 = vld [vmem:[%s403 + $0x58] sm:$0xff]
        %v423 = vld [vmem:[%s403 + $0x60] sm:$0xff]
        %v424 = vld [vmem:[%s403 + $0x68] sm:$0xff]
        %v425 = vld [vmem:[%s403 + $0x70] sm:$0xff]
        %v426 = vld [vmem:[%s403 + $0x78] sm:$0xff]
        %v427 = vld [vmem:[%s403 + $0x80] sm:$0xff]
        %v428 = vld [vmem:[%s403 + $0x88] sm:$0xff]
        %v429 = vld [vmem:[%s403 + $0x90] sm:$0xff]
        %v430 = vld [vmem:[%s403 + $0x98] sm:$0xff]
        %v431 = vld [vmem:[%s403 + $0xa0] sm:$0xff]
        %v432 = vld [vmem:[%s403 + $0xa8] sm:$0xff]
        %v433 = vld [vmem:[%s403 + $0xb0] sm:$0xff]
        %v434 = vld [vmem:[%s403 + $0xb8] sm:$0xff]
        %v435 = vld [vmem:[%s403 + $0xc0] sm:$0xff]
        %v436 = vld [vmem:[%s403 + $0xc8] sm:$0xff]
        %v437 = vld [vmem:[%s403 + $0xd0] sm:$0xff]
        %v438 = vld [vmem:[%s403 + $0xd8] sm:$0xff]
        %v439 = vld [vmem:[%s403 + $0xe0] sm:$0xff]
        %v440 = vld [vmem:[%s403 + $0xe8] sm:$0xff]
        %v441 = vld [vmem:[%s403 + $0xf0] sm:$0xff]
        %v442 = vld [vmem:[%s403 + $0xf8] sm:$0xff]
        %v443 = vld [vmem:[%s403 + $0x100] sm:$0xff]
        %v444 = vld [vmem:[%s403 + $0x108] sm:$0xff]
        %v445 = vld [vmem:[%s403 + $0x110] sm:$0xff]
        %v446 = vld [vmem:[%s403 + $0x118] sm:$0xff]
        %v447 = vld [vmem:[%s403 + $0x120] sm:$0xff]
        %v448 = vld [vmem:[%s403 + $0x128] sm:$0xff]
        %v449 = vld [vmem:[%s403 + $0x130] sm:$0xff]
        %v450 = vld [vmem:[%s403 + $0x138] sm:$0xff]
        %v451 = vld [vmem:[%s403 + $0x140] sm:$0xff]
        %v452 = vld [vmem:[%s403 + $0x148] sm:$0xff]
        %v453 = vld [vmem:[%s403 + $0x150] sm:$0xff]
        %v454 = vld [vmem:[%s403 + $0x158] sm:$0xff]
        %v455 = vld [vmem:[%s403 + $0x160] sm:$0xff]
        %v456 = vld [vmem:[%s403 + $0x168] sm:$0xff]
        %v457 = vld [vmem:[%s403 + $0x170] sm:$0xff]
        %v458 = vld [vmem:[%s403 + $0x178] sm:$0xff]
        %v459 = vld [vmem:[%s403 + $0x180] sm:$0xff]
        %v460 = vld [vmem:[%s403 + $0x188] sm:$0xff]
        %v461 = vld [vmem:[%s403 + $0x190] sm:$0xff]
        %v462 = vld [vmem:[%s403 + $0x198] sm:$0xff]
        %v463 = vld [vmem:[%s403 + $0x1a0] sm:$0xff]
        %v464 = vld [vmem:[%s403 + $0x1a8] sm:$0xff]
        %v465 = vld [vmem:[%s403 + $0x1b0] sm:$0xff]
        %v466 = vld [vmem:[%s403 + $0x1b8] sm:$0xff]
        %v467 = vld [vmem:[%s403 + $0x1c0] sm:$0xff]
        %v468 = vld [vmem:[%s403 + $0x1c8] sm:$0xff]
        %v469 = vld [vmem:[%s403 + $0x1d0] sm:$0xff]
        %v470 = vld [vmem:[%s403 + $0x1d8] sm:$0xff]
        %v471 = vld [vmem:[%s403 + $0x1e0] sm:$0xff]
        %v472 = vld [vmem:[%s403 + $0x1e8] sm:$0xff]
        %v473 = vld [vmem:[%s403 + $0x1f0] sm:$0xff]
        %v474 = vld [vmem:[%s403 + $0x1f8] sm:$0xff]
        %v475 = vld [vmem:[%s403 + $0x200] sm:$0xff]
        %v476 = vld [vmem:[%s403 + $0x208] sm:$0xff]
        %v477 = vld [vmem:[%s403 + $0x210] sm:$0xff]
        %v478 = vld [vmem:[%s403 + $0x218] sm:$0xff]
        %v479 = vld [vmem:[%s403 + $0x220] sm:$0xff]
        %v480 = vld [vmem:[%s403 + $0x228] sm:$0xff]
        %v481 = vld [vmem:[%s403 + $0x230] sm:$0xff]
        %v482 = vld [vmem:[%s403 + $0x238] sm:$0xff]
        %v483 = vld [vmem:[%s403 + $0x240] sm:$0xff]
        %v484 = vld [vmem:[%s403 + $0x248] sm:$0xff]
        %v485 = vld [vmem:[%s403 + $0x250] sm:$0xff]
        %v486 = vld [vmem:[%s403 + $0x258] sm:$0xff]
        %v487 = vld [vmem:[%s403 + $0x260] sm:$0xff]
        %v488 = vld [vmem:[%s403 + $0x268] sm:$0xff]
        %v489 = vld [vmem:[%s403 + $0x270] sm:$0xff]
        %v490 = vld [vmem:[%s403 + $0x278] sm:$0xff]
        %v491 = vld [vmem:[%s403 + $0x280] sm:$0xff]
        %v492 = vld [vmem:[%s403 + $0x288] sm:$0xff]
        %v493 = vld [vmem:[%s403 + $0x290] sm:$0xff]
        %v494 = vld [vmem:[%s403 + $0x298] sm:$0xff]
        %v495 = vld [vmem:[%s403 + $0x2a0] sm:$0xff]
        %v496 = vld [vmem:[%s403 + $0x2a8] sm:$0xff]
        %v497 = vld [vmem:[%s403 + $0x2b0] sm:$0xff]
        %v498 = vld [vmem:[%s403 + $0x2b8] sm:$0xff]
        %v499 = vld [vmem:[%s403 + $0x2c0] sm:$0xff]
        %v500 = vld [vmem:[%s403 + $0x2c8] sm:$0xff]
        %v501 = vld [vmem:[%s403 + $0x2d0] sm:$0xff]
        %v502 = vld [vmem:[%s403 + $0x2d8] sm:$0xff]
        %v503 = vld [vmem:[%s403 + $0x2e0] sm:$0xff]
        %v504 = vld [vmem:[%s403 + $0x2e8] sm:$0xff]
        %v505 = vld [vmem:[%s403 + $0x2f0] sm:$0xff]
        %v506 = vld [vmem:[%s403 + $0x2f8] sm:$0xff]
        %v507 = vld [vmem:[%s403 + $0x300] sm:$0xff]
        %v508 = vld [vmem:[%s403 + $0x308] sm:$0xff]
        %v509 = vld [vmem:[%s403 + $0x310] sm:$0xff]
        %v510 = vld [vmem:[%s403 + $0x318] sm:$0xff]
        %v511 = vld [vmem:[%s403 + $0x320] sm:$0xff]
        %v512 = vld [vmem:[%s403 + $0x328] sm:$0xff]
        %v513 = vld [vmem:[%s403 + $0x330] sm:$0xff]
        %v514 = vld [vmem:[%s403 + $0x338] sm:$0xff]
        %v515 = vld [vmem:[%s403 + $0x340] sm:$0xff]
        %v516 = vld [vmem:[%s403 + $0x348] sm:$0xff]
        %v517 = vld [vmem:[%s403 + $0x350] sm:$0xff]
        %v518 = vld [vmem:[%s403 + $0x358] sm:$0xff]
        %v519 = vld [vmem:[%s403 + $0x360] sm:$0xff]
        %v520 = vld [vmem:[%s403 + $0x368] sm:$0xff]
        %v521 = vld [vmem:[%s403 + $0x370] sm:$0xff]
        %v522 = vld [vmem:[%s403 + $0x378] sm:$0xff]
        %v523 = vld [vmem:[%s403 + $0x380] sm:$0xff]
        %v524 = vld [vmem:[%s403 + $0x388] sm:$0xff]
        %v525 = vld [vmem:[%s403 + $0x390] sm:$0xff]
        %v526 = vld [vmem:[%s403 + $0x398] sm:$0xff]
        %v527 = vld [vmem:[%s403 + $0x3a0] sm:$0xff]
        %v528 = vld [vmem:[%s403 + $0x3a8] sm:$0xff]
        %v529 = vld [vmem:[%s403 + $0x3b0] sm:$0xff]
        %v530 = vld [vmem:[%s403 + $0x3b8] sm:$0xff]
        %v531 = vld [vmem:[%s403 + $0x3c0] sm:$0xff]
        %v532 = vld [vmem:[%s403 + $0x3c8] sm:$0xff]
        %v533 = vld [vmem:[%s403 + $0x3d0] sm:$0xff]
        %v534 = vld [vmem:[%s403 + $0x3d8] sm:$0xff]
        %v535 = vld [vmem:[%s403 + $0x3e0] sm:$0xff]
        %v536 = vld [vmem:[%s403 + $0x3e8] sm:$0xff]
        %v537 = vld [vmem:[%s403 + $0x3f0] sm:$0xff]
        %v538 = vld [vmem:[%s403 + $0x3f8] sm:$0xff]
        %v539 = vpack.c.bf16 %v412, %v411
        %v540 = vpack.c.bf16 %v414, %v413
        %v541 = vpack.c.bf16 %v416, %v415
        %v542 = vpack.c.bf16 %v418, %v417
        %v543 = vpack.c.bf16 %v420, %v419
        %v544 = vpack.c.bf16 %v422, %v421
        %v545 = vpack.c.bf16 %v424, %v423
        %v546 = vpack.c.bf16 %v426, %v425
        %v547 = vpack.c.bf16 %v428, %v427
        %v548 = vpack.c.bf16 %v430, %v429
        %v549 = vpack.c.bf16 %v432, %v431
        %v550 = vpack.c.bf16 %v434, %v433
        %v551 = vpack.c.bf16 %v436, %v435
        %v552 = vpack.c.bf16 %v438, %v437
        %v553 = vpack.c.bf16 %v440, %v439
        %v554 = vpack.c.bf16 %v442, %v441
        %v555 = vpack.c.bf16 %v444, %v443
        %v556 = vpack.c.bf16 %v446, %v445
        %v557 = vpack.c.bf16 %v448, %v447
        %v558 = vpack.c.bf16 %v450, %v449
        %v559 = vpack.c.bf16 %v452, %v451
        %v560 = vpack.c.bf16 %v454, %v453
        %v561 = vpack.c.bf16 %v456, %v455
        %v562 = vpack.c.bf16 %v458, %v457
        %v563 = vpack.c.bf16 %v460, %v459
        %v564 = vpack.c.bf16 %v462, %v461
        %v565 = vpack.c.bf16 %v464, %v463
        %v566 = vpack.c.bf16 %v466, %v465
        %v567 = vpack.c.bf16 %v468, %v467
        %v568 = vpack.c.bf16 %v470, %v469
        %v569 = vpack.c.bf16 %v472, %v471
        %v570 = vpack.c.bf16 %v474, %v473
        %v571 = vpack.c.bf16 %v476, %v475
        %v572 = vpack.c.bf16 %v478, %v477
        %v573 = vpack.c.bf16 %v480, %v479
        %v574 = vpack.c.bf16 %v482, %v481
        %v575 = vpack.c.bf16 %v484, %v483
        %v576 = vpack.c.bf16 %v486, %v485
        %v577 = vpack.c.bf16 %v488, %v487
        %v578 = vpack.c.bf16 %v490, %v489
        %v579 = vpack.c.bf16 %v492, %v491
        %v580 = vpack.c.bf16 %v494, %v493
        %v581 = vpack.c.bf16 %v496, %v495
        %v582 = vpack.c.bf16 %v498, %v497
        %v583 = vpack.c.bf16 %v500, %v499
        %v584 = vpack.c.bf16 %v502, %v501
        %v585 = vpack.c.bf16 %v504, %v503
        %v586 = vpack.c.bf16 %v506, %v505
        %v587 = vpack.c.bf16 %v508, %v507
        %v588 = vpack.c.bf16 %v510, %v509
        %v589 = vpack.c.bf16 %v512, %v511
        %v590 = vpack.c.bf16 %v514, %v513
        %v591 = vpack.c.bf16 %v516, %v515
        %v592 = vpack.c.bf16 %v518, %v517
        %v593 = vpack.c.bf16 %v520, %v519
        %v594 = vpack.c.bf16 %v522, %v521
        %v595 = vpack.c.bf16 %v524, %v523
        %v596 = vpack.c.bf16 %v526, %v525
        %v597 = vpack.c.bf16 %v528, %v527
        %v598 = vpack.c.bf16 %v530, %v529
        %v599 = vpack.c.bf16 %v532, %v531
        %v600 = vpack.c.bf16 %v534, %v533
        %v601 = vpack.c.bf16 %v536, %v535
        %v602 = vpack.c.bf16 %v538, %v537
        %v603 = vld [vmem:[%s1] sm:$0xf]
        %v604 = vld [vmem:[%s1 + $0x4] sm:$0xf]
        %v605 = vld [vmem:[%s1 + $0x8] sm:$0xf]
        %v606 = vld [vmem:[%s1 + $0xc] sm:$0xf]
        %v607 = vld [vmem:[%s2] sm:$0xff]
        %v608 = vld [vmem:[%s2 + $0x8] sm:$0xff]
        %v609 = vld [vmem:[%s2 + $0x10] sm:$0xff]
        %v610 = vld [vmem:[%s2 + $0x18] sm:$0xff]
        %612 = vset.pattern.permute.xlu0 0
        %613 = vperm.xlu0 %612, %v607
        %v614 = vpop.permute.xlu0 %613
        %617 = vset.pattern.permute.xlu0 0
        %618 = vperm.xlu0 %617, %v608
        %v619 = vpop.permute.xlu0 %618
        %622 = vset.pattern.permute.xlu0 0
        %623 = vperm.xlu0 %622, %v609
        %v624 = vpop.permute.xlu0 %623
        %627 = vset.pattern.permute.xlu0 0
        %628 = vperm.xlu0 %627, %v610
        %v629 = vpop.permute.xlu0 %628
        %v635 = vunpack.c.l.b16 %v603
        %v636 = vunpack.c.l.b16 %v604
        %v637 = vunpack.c.l.b16 %v605
        %v638 = vunpack.c.l.b16 %v606
        %v639 = vpack.c.b16 %v636, %v635
        %v640 = vpack.c.b16 %v638, %v637
        %vm641 = vcmask 261120
        %v643 = vsel %vm641, %v639, 0
        %v646 = vsel %vm641, %v640, 0
        %v649 = vsel %vm641, %v539, 0
        %v652 = vsel %vm641, %v540, 0
        %v655 = vsel %vm641, %v541, 0
        %v658 = vsel %vm641, %v542, 0
        %v661 = vsel %vm641, %v543, 0
        %v664 = vsel %vm641, %v544, 0
        %v667 = vsel %vm641, %v545, 0
        %v670 = vsel %vm641, %v546, 0
        %v673 = vsel %vm641, %v547, 0
        %v676 = vsel %vm641, %v548, 0
        %v679 = vsel %vm641, %v549, 0
        %v682 = vsel %vm641, %v550, 0
        %v685 = vsel %vm641, %v551, 0
        %v688 = vsel %vm641, %v552, 0
        %v691 = vsel %vm641, %v553, 0
        %v694 = vsel %vm641, %v554, 0
        %v697 = vsel %vm641, %v555, 0
        %v700 = vsel %vm641, %v556, 0
        %v703 = vsel %vm641, %v557, 0
        %v706 = vsel %vm641, %v558, 0
        %v709 = vsel %vm641, %v559, 0
        %v712 = vsel %vm641, %v560, 0
        %v715 = vsel %vm641, %v561, 0
        %v718 = vsel %vm641, %v562, 0
        %v721 = vsel %vm641, %v563, 0
        %v724 = vsel %vm641, %v564, 0
        %v727 = vsel %vm641, %v565, 0
        %v730 = vsel %vm641, %v566, 0
        %v733 = vsel %vm641, %v567, 0
        %v736 = vsel %vm641, %v568, 0
        %v739 = vsel %vm641, %v569, 0
        %v742 = vsel %vm641, %v570, 0
        %v745 = vsel %vm641, %v571, 0
        %v748 = vsel %vm641, %v572, 0
        %v751 = vsel %vm641, %v573, 0
        %v754 = vsel %vm641, %v574, 0
        %v757 = vsel %vm641, %v575, 0
        %v760 = vsel %vm641, %v576, 0
        %v763 = vsel %vm641, %v577, 0
        %v766 = vsel %vm641, %v578, 0
        %v769 = vsel %vm641, %v579, 0
        %v772 = vsel %vm641, %v580, 0
        %v775 = vsel %vm641, %v581, 0
        %v778 = vsel %vm641, %v582, 0
        %v781 = vsel %vm641, %v583, 0
        %v784 = vsel %vm641, %v584, 0
        %v787 = vsel %vm641, %v585, 0
        %v790 = vsel %vm641, %v586, 0
        %v793 = vsel %vm641, %v587, 0
        %v796 = vsel %vm641, %v588, 0
        %v799 = vsel %vm641, %v589, 0
        %v802 = vsel %vm641, %v590, 0
        %v805 = vsel %vm641, %v591, 0
        %v808 = vsel %vm641, %v592, 0
        %v811 = vsel %vm641, %v593, 0
        %v814 = vsel %vm641, %v594, 0
        %v817 = vsel %vm641, %v595, 0
        %v820 = vsel %vm641, %v596, 0
        %v823 = vsel %vm641, %v597, 0
        %v826 = vsel %vm641, %v598, 0
        %v829 = vsel %vm641, %v599, 0
        %v832 = vsel %vm641, %v600, 0
        %v835 = vsel %vm641, %v601, 0
        %v838 = vsel %vm641, %v602, 0
        %840 = vmatprep.subr.bf16.mxu0 0
        %841 = vmatpush1.bf16.xpose.msra.mxu0 %v649
        %842 = vmatprep.subr.bf16.mxu0 0
        %843 = vmatpush1.bf16.xpose.msra.mxu0 %v652
        %844 = vmatprep.subr.bf16.mxu0 0
        %845 = vmatpush1.bf16.xpose.msra.mxu0 %v655
        %846 = vmatprep.subr.bf16.mxu0 0
        %847 = vmatpush1.bf16.xpose.msra.mxu0 %v658
        %848 = vmatprep.subr.bf16.mxu0 0
        %849 = vmatpush1.bf16.xpose.msra.mxu0 %v661
        %850 = vmatprep.subr.bf16.mxu0 0
        %851 = vmatpush1.bf16.xpose.msra.mxu0 %v664
        %852 = vmatprep.subr.bf16.mxu0 0
        %853 = vmatpush1.bf16.xpose.msra.mxu0 %v667
        %854 = vmatprep.subr.bf16.mxu0 0
        %855 = vmatpush1.bf16.xpose.msra.mxu0 %v670
        %856 = vmatprep.subr.bf16.mxu0 0
        %857 = vmatpush1.bf16.xpose.msra.mxu0 %v673
        %858 = vmatprep.subr.bf16.mxu0 0
        %859 = vmatpush1.bf16.xpose.msra.mxu0 %v676
        %860 = vmatprep.subr.bf16.mxu0 0
        %861 = vmatpush1.bf16.xpose.msra.mxu0 %v679
        %862 = vmatprep.subr.bf16.mxu0 0
        %863 = vmatpush1.bf16.xpose.msra.mxu0 %v682
        %864 = vmatprep.subr.bf16.mxu0 0
        %865 = vmatpush1.bf16.xpose.msra.mxu0 %v685
        %866 = vmatprep.subr.bf16.mxu0 0
        %867 = vmatpush1.bf16.xpose.msra.mxu0 %v688
        %868 = vmatprep.subr.bf16.mxu0 0
        %869 = vmatpush1.bf16.xpose.msra.mxu0 %v691
        %870 = vmatprep.subr.bf16.mxu0 0
        %871 = vmatpush1.bf16.xpose.msra.mxu0 %v694
        %872 = vmatprep.mubr.bf16.mxu0 0
        %873 = vmatmul.mubr.bf16.gmra.mrb[0].mxu0 %v643
        %v874 = vpop.f32.mrb[0].mxu0
        %v875 = vadd.f32 %v614, %v874
        %v876 = vpop.f32.mrb[0].mxu0
        %v877 = vadd.f32 %v614, %v876
        %v878 = vpop.f32.mrb[0].mxu0
        %v879 = vadd.f32 %v619, %v878
        %v880 = vpop.f32.mrb[0].mxu0
        %v881 = vadd.f32 %v619, %v880
        %882 = vmatprep.mubr.bf16.mxu0 0
        %883 = vmatmul.mubr.bf16.gmra.mrb[0].mxu0 %v646
        %v884 = vpop.f32.mrb[0].mxu0
        %v885 = vadd.f32 %v624, %v884
        %v886 = vpop.f32.mrb[0].mxu0
        %v887 = vadd.f32 %v624, %v886
        %v888 = vpop.f32.mrb[0].mxu0
        %v889 = vadd.f32 %v629, %v888
        %v890 = vpop.f32.mrb[0].mxu0
        %v891 = vadd.f32 %v629, %v890
        %892 = vdwg.mxu0
        %893 = vmatprep.subr.bf16.mxu0 0
        %894 = vmatpush1.bf16.xpose.msra.mxu0 %v697
        %895 = vmatprep.subr.bf16.mxu0 0
        %896 = vmatpush1.bf16.xpose.msra.mxu0 %v700
        %897 = vmatprep.subr.bf16.mxu0 0
        %898 = vmatpush1.bf16.xpose.msra.mxu0 %v703
        %899 = vmatprep.subr.bf16.mxu0 0
        %900 = vmatpush1.bf16.xpose.msra.mxu0 %v706
        %901 = vmatprep.subr.bf16.mxu0 0
        %902 = vmatpush1.bf16.xpose.msra.mxu0 %v709
        %903 = vmatprep.subr.bf16.mxu0 0
        %904 = vmatpush1.bf16.xpose.msra.mxu0 %v712
        %905 = vmatprep.subr.bf16.mxu0 0
        %906 = vmatpush1.bf16.xpose.msra.mxu0 %v715
        %907 = vmatprep.subr.bf16.mxu0 0
        %908 = vmatpush1.bf16.xpose.msra.mxu0 %v718
        %909 = vmatprep.subr.bf16.mxu0 0
        %910 = vmatpush1.bf16.xpose.msra.mxu0 %v721
        %911 = vmatprep.subr.bf16.mxu0 0
        %912 = vmatpush1.bf16.xpose.msra.mxu0 %v724
        %913 = vmatprep.subr.bf16.mxu0 0
        %914 = vmatpush1.bf16.xpose.msra.mxu0 %v727
        %915 = vmatprep.subr.bf16.mxu0 0
        %916 = vmatpush1.bf16.xpose.msra.mxu0 %v730
        %917 = vmatprep.subr.bf16.mxu0 0
        %918 = vmatpush1.bf16.xpose.msra.mxu0 %v733
        %919 = vmatprep.subr.bf16.mxu0 0
        %920 = vmatpush1.bf16.xpose.msra.mxu0 %v736
        %921 = vmatprep.subr.bf16.mxu0 0
        %922 = vmatpush1.bf16.xpose.msra.mxu0 %v739
        %923 = vmatprep.subr.bf16.mxu0 0
        %924 = vmatpush1.bf16.xpose.msra.mxu0 %v742
        %925 = vmatprep.mubr.bf16.mxu0 0
        %926 = vmatmul.mubr.bf16.gmra.mrb[0].mxu0 %v643
        %v927 = vpop.f32.mrb[0].mxu0
        %v928 = vadd.f32 %v614, %v927
        %v929 = vpop.f32.mrb[0].mxu0
        %v930 = vadd.f32 %v614, %v929
        %v931 = vpop.f32.mrb[0].mxu0
        %v932 = vadd.f32 %v619, %v931
        %v933 = vpop.f32.mrb[0].mxu0
        %v934 = vadd.f32 %v619, %v933
        %935 = vmatprep.mubr.bf16.mxu0 0
        %936 = vmatmul.mubr.bf16.gmra.mrb[0].mxu0 %v646
        %v937 = vpop.f32.mrb[0].mxu0
        %v938 = vadd.f32 %v624, %v937
        %v939 = vpop.f32.mrb[0].mxu0
        %v940 = vadd.f32 %v624, %v939
        %v941 = vpop.f32.mrb[0].mxu0
        %v942 = vadd.f32 %v629, %v941
        %v943 = vpop.f32.mrb[0].mxu0
        %v944 = vadd.f32 %v629, %v943
        %945 = vdwg.mxu0
        %946 = vmatprep.subr.bf16.mxu0 0
        %947 = vmatpush1.bf16.xpose.msra.mxu0 %v745
        %948 = vmatprep.subr.bf16.mxu0 0
        %949 = vmatpush1.bf16.xpose.msra.mxu0 %v748
        %950 = vmatprep.subr.bf16.mxu0 0
        %951 = vmatpush1.bf16.xpose.msra.mxu0 %v751
        %952 = vmatprep.subr.bf16.mxu0 0
        %953 = vmatpush1.bf16.xpose.msra.mxu0 %v754
        %954 = vmatprep.subr.bf16.mxu0 0
        %955 = vmatpush1.bf16.xpose.msra.mxu0 %v757
        %956 = vmatprep.subr.bf16.mxu0 0
        %957 = vmatpush1.bf16.xpose.msra.mxu0 %v760
        %958 = vmatprep.subr.bf16.mxu0 0
        %959 = vmatpush1.bf16.xpose.msra.mxu0 %v763
        %960 = vmatprep.subr.bf16.mxu0 0
        %961 = vmatpush1.bf16.xpose.msra.mxu0 %v766
        %962 = vmatprep.subr.bf16.mxu0 0
        %963 = vmatpush1.bf16.xpose.msra.mxu0 %v769
        %964 = vmatprep.subr.bf16.mxu0 0
        %965 = vmatpush1.bf16.xpose.msra.mxu0 %v772
        %966 = vmatprep.subr.bf16.mxu0 0
        %967 = vmatpush1.bf16.xpose.msra.mxu0 %v775
        %968 = vmatprep.subr.bf16.mxu0 0
        %969 = vmatpush1.bf16.xpose.msra.mxu0 %v778
        %970 = vmatprep.subr.bf16.mxu0 0
        %971 = vmatpush1.bf16.xpose.msra.mxu0 %v781
        %972 = vmatprep.subr.bf16.mxu0 0
        %973 = vmatpush1.bf16.xpose.msra.mxu0 %v784
        %974 = vmatprep.subr.bf16.mxu0 0
        %975 = vmatpush1.bf16.xpose.msra.mxu0 %v787
        %976 = vmatprep.subr.bf16.mxu0 0
        %977 = vmatpush1.bf16.xpose.msra.mxu0 %v790
        %978 = vmatprep.mubr.bf16.mxu0 0
        %979 = vmatmul.mubr.bf16.gmra.mrb[0].mxu0 %v643
        %v980 = vpop.f32.mrb[0].mxu0
        %v981 = vadd.f32 %v614, %v980
        %v982 = vpop.f32.mrb[0].mxu0
        %v983 = vadd.f32 %v614, %v982
        %v984 = vpop.f32.mrb[0].mxu0
        %v985 = vadd.f32 %v619, %v984
        %v986 = vpop.f32.mrb[0].mxu0
        %v987 = vadd.f32 %v619, %v986
        %988 = vmatprep.mubr.bf16.mxu0 0
        %989 = vmatmul.mubr.bf16.gmra.mrb[0].mxu0 %v646
        %v990 = vpop.f32.mrb[0].mxu0
        %v991 = vadd.f32 %v624, %v990
        %v992 = vpop.f32.mrb[0].mxu0
        %v993 = vadd.f32 %v624, %v992
        %v994 = vpop.f32.mrb[0].mxu0
        %v995 = vadd.f32 %v629, %v994
        %v996 = vpop.f32.mrb[0].mxu0
        %v997 = vadd.f32 %v629, %v996
        %998 = vdwg.mxu0
        %999 = vmatprep.subr.bf16.mxu0 0
        %1000 = vmatpush1.bf16.xpose.msra.mxu0 %v793
        %1001 = vmatprep.subr.bf16.mxu0 0
        %1002 = vmatpush1.bf16.xpose.msra.mxu0 %v796
        %1003 = vmatprep.subr.bf16.mxu0 0
        %1004 = vmatpush1.bf16.xpose.msra.mxu0 %v799
        %1005 = vmatprep.subr.bf16.mxu0 0
        %1006 = vmatpush1.bf16.xpose.msra.mxu0 %v802
        %1007 = vmatprep.subr.bf16.mxu0 0
        %1008 = vmatpush1.bf16.xpose.msra.mxu0 %v805
        %1009 = vmatprep.subr.bf16.mxu0 0
        %1010 = vmatpush1.bf16.xpose.msra.mxu0 %v808
        %1011 = vmatprep.subr.bf16.mxu0 0
        %1012 = vmatpush1.bf16.xpose.msra.mxu0 %v811
        %1013 = vmatprep.subr.bf16.mxu0 0
        %1014 = vmatpush1.bf16.xpose.msra.mxu0 %v814
        %1015 = vmatprep.subr.bf16.mxu0 0
        %1016 = vmatpush1.bf16.xpose.msra.mxu0 %v817
        %1017 = vmatprep.subr.bf16.mxu0 0
        %1018 = vmatpush1.bf16.xpose.msra.mxu0 %v820
        %1019 = vmatprep.subr.bf16.mxu0 0
        %1020 = vmatpush1.bf16.xpose.msra.mxu0 %v823
        %1021 = vmatprep.subr.bf16.mxu0 0
        %1022 = vmatpush1.bf16.xpose.msra.mxu0 %v826
        %1023 = vmatprep.subr.bf16.mxu0 0
        %1024 = vmatpush1.bf16.xpose.msra.mxu0 %v829
        %1025 = vmatprep.subr.bf16.mxu0 0
        %1026 = vmatpush1.bf16.xpose.msra.mxu0 %v832
        %1027 = vmatprep.subr.bf16.mxu0 0
        %1028 = vmatpush1.bf16.xpose.msra.mxu0 %v835
        %1029 = vmatprep.subr.bf16.mxu0 0
        %1030 = vmatpush1.bf16.xpose.msra.mxu0 %v838
        %1031 = vmatprep.mubr.bf16.mxu0 0
        %1032 = vmatmul.mubr.bf16.gmra.mrb[0].mxu0 %v643
        %v1033 = vpop.f32.mrb[0].mxu0
        %v1034 = vadd.f32 %v614, %v1033
        %v1035 = vpop.f32.mrb[0].mxu0
        %v1036 = vadd.f32 %v614, %v1035
        %v1037 = vpop.f32.mrb[0].mxu0
        %v1038 = vadd.f32 %v619, %v1037
        %v1039 = vpop.f32.mrb[0].mxu0
        %v1040 = vadd.f32 %v619, %v1039
        %1041 = vmatprep.mubr.bf16.mxu0 0
        %1042 = vmatmul.mubr.bf16.gmra.mrb[0].mxu0 %v646
        %v1043 = vpop.f32.mrb[0].mxu0
        %v1044 = vadd.f32 %v624, %v1043
        %v1045 = vpop.f32.mrb[0].mxu0
        %v1046 = vadd.f32 %v624, %v1045
        %v1047 = vpop.f32.mrb[0].mxu0
        %v1048 = vadd.f32 %v629, %v1047
        %v1049 = vpop.f32.mrb[0].mxu0
        %v1050 = vadd.f32 %v629, %v1049
        %1051 = vdwg.mxu0
        %v1052 = vxor.u32 %v875, 2147483648
        %v1053 = vxor.u32 %v877, 2147483648
        %v1054 = vxor.u32 %v928, 2147483648
        %v1055 = vxor.u32 %v930, 2147483648
        %v1056 = vxor.u32 %v981, 2147483648
        %v1057 = vxor.u32 %v983, 2147483648
        %v1058 = vxor.u32 %v1034, 2147483648
        %v1059 = vxor.u32 %v1036, 2147483648
        %v1060 = vxor.u32 %v879, 2147483648
        %v1061 = vxor.u32 %v881, 2147483648
        %v1062 = vxor.u32 %v932, 2147483648
        %v1063 = vxor.u32 %v934, 2147483648
        %v1064 = vxor.u32 %v985, 2147483648
        %v1065 = vxor.u32 %v987, 2147483648
        %v1066 = vxor.u32 %v1038, 2147483648
        %v1067 = vxor.u32 %v1040, 2147483648
        %v1068 = vxor.u32 %v885, 2147483648
        %v1069 = vxor.u32 %v887, 2147483648
        %v1070 = vxor.u32 %v938, 2147483648
        %v1071 = vxor.u32 %v940, 2147483648
        %v1072 = vxor.u32 %v991, 2147483648
        %v1073 = vxor.u32 %v993, 2147483648
        %v1074 = vxor.u32 %v1044, 2147483648
        %v1075 = vxor.u32 %v1046, 2147483648
        %v1076 = vxor.u32 %v889, 2147483648
        %v1077 = vxor.u32 %v891, 2147483648
        %v1078 = vxor.u32 %v942, 2147483648
        %v1079 = vxor.u32 %v944, 2147483648
        %v1080 = vxor.u32 %v995, 2147483648
        %v1081 = vxor.u32 %v997, 2147483648
        %v1082 = vxor.u32 %v1048, 2147483648
        %v1083 = vxor.u32 %v1050, 2147483648
        %v1084 = vmul.f32 %v1052, 1.442695
        %v1085 = vpow.pop %v1084
        %v1086 = vmul.f32 %v1053, 1.442695
        %v1087 = vpow.pop %v1086
        %v1088 = vmul.f32 %v1054, 1.442695
        %v1089 = vpow.pop %v1088
        %v1090 = vmul.f32 %v1055, 1.442695
        %v1091 = vpow.pop %v1090
        %v1092 = vmul.f32 %v1056, 1.442695
        %v1093 = vpow.pop %v1092
        %v1094 = vmul.f32 %v1057, 1.442695
        %v1095 = vpow.pop %v1094
        %v1096 = vmul.f32 %v1058, 1.442695
        %v1097 = vpow.pop %v1096
        %v1098 = vmul.f32 %v1059, 1.442695
        %v1099 = vpow.pop %v1098
        %v1100 = vmul.f32 %v1060, 1.442695
        %v1101 = vpow.pop %v1100
        %v1102 = vmul.f32 %v1061, 1.442695
        %v1103 = vpow.pop %v1102
        %v1104 = vmul.f32 %v1062, 1.442695
        %v1105 = vpow.pop %v1104
        %v1106 = vmul.f32 %v1063, 1.442695
        %v1107 = vpow.pop %v1106
        %v1108 = vmul.f32 %v1064, 1.442695
        %v1109 = vpow.pop %v1108
        %v1110 = vmul.f32 %v1065, 1.442695
        %v1111 = vpow.pop %v1110
        %v1112 = vmul.f32 %v1066, 1.442695
        %v1113 = vpow.pop %v1112
        %v1114 = vmul.f32 %v1067, 1.442695
        %v1115 = vpow.pop %v1114
        %v1116 = vmul.f32 %v1068, 1.442695
        %v1117 = vpow.pop %v1116
        %v1118 = vmul.f32 %v1069, 1.442695
        %v1119 = vpow.pop %v1118
        %v1120 = vmul.f32 %v1070, 1.442695
        %v1121 = vpow.pop %v1120
        %v1122 = vmul.f32 %v1071, 1.442695
        %v1123 = vpow.pop %v1122
        %v1124 = vmul.f32 %v1072, 1.442695
        %v1125 = vpow.pop %v1124
        %v1126 = vmul.f32 %v1073, 1.442695
        %v1127 = vpow.pop %v1126
        %v1128 = vmul.f32 %v1074, 1.442695
        %v1129 = vpow.pop %v1128
        %v1130 = vmul.f32 %v1075, 1.442695
        %v1131 = vpow.pop %v1130
        %v1132 = vmul.f32 %v1076, 1.442695
        %v1133 = vpow.pop %v1132
        %v1134 = vmul.f32 %v1077, 1.442695
        %v1135 = vpow.pop %v1134
        %v1136 = vmul.f32 %v1078, 1.442695
        %v1137 = vpow.pop %v1136
        %v1138 = vmul.f32 %v1079, 1.442695
        %v1139 = vpow.pop %v1138
        %v1140 = vmul.f32 %v1080, 1.442695
        %v1141 = vpow.pop %v1140
        %v1142 = vmul.f32 %v1081, 1.442695
        %v1143 = vpow.pop %v1142
        %v1144 = vmul.f32 %v1082, 1.442695
        %v1145 = vpow.pop %v1144
        %v1146 = vmul.f32 %v1083, 1.442695
        %v1147 = vpow.pop %v1146
        %v1148 = vadd.f32 %v1085, 1.0
        %v1149 = vadd.f32 %v1087, 1.0
        %v1150 = vadd.f32 %v1089, 1.0
        %v1151 = vadd.f32 %v1091, 1.0
        %v1152 = vadd.f32 %v1093, 1.0
        %v1153 = vadd.f32 %v1095, 1.0
        %v1154 = vadd.f32 %v1097, 1.0
        %v1155 = vadd.f32 %v1099, 1.0
        %v1156 = vadd.f32 %v1101, 1.0
        %v1157 = vadd.f32 %v1103, 1.0
        %v1158 = vadd.f32 %v1105, 1.0
        %v1159 = vadd.f32 %v1107, 1.0
        %v1160 = vadd.f32 %v1109, 1.0
        %v1161 = vadd.f32 %v1111, 1.0
        %v1162 = vadd.f32 %v1113, 1.0
        %v1163 = vadd.f32 %v1115, 1.0
        %v1164 = vadd.f32 %v1117, 1.0
        %v1165 = vadd.f32 %v1119, 1.0
        %v1166 = vadd.f32 %v1121, 1.0
        %v1167 = vadd.f32 %v1123, 1.0
        %v1168 = vadd.f32 %v1125, 1.0
        %v1169 = vadd.f32 %v1127, 1.0
        %v1170 = vadd.f32 %v1129, 1.0
        %v1171 = vadd.f32 %v1131, 1.0
        %v1172 = vadd.f32 %v1133, 1.0
        %v1173 = vadd.f32 %v1135, 1.0
        %v1174 = vadd.f32 %v1137, 1.0
        %v1175 = vadd.f32 %v1139, 1.0
        %v1176 = vadd.f32 %v1141, 1.0
        %v1177 = vadd.f32 %v1143, 1.0
        %v1178 = vadd.f32 %v1145, 1.0
        %v1179 = vadd.f32 %v1147, 1.0
        %v1180 = vrcp.pop %v1148
        %v1181 = vmul.f32 1.0, %v1180
        %v1182 = vrcp.pop %v1149
        %v1183 = vmul.f32 1.0, %v1182
        %v1184 = vrcp.pop %v1150
        %v1185 = vmul.f32 1.0, %v1184
        %v1186 = vrcp.pop %v1151
        %v1187 = vmul.f32 1.0, %v1186
        %v1188 = vrcp.pop %v1152
        %v1189 = vmul.f32 1.0, %v1188
        %v1190 = vrcp.pop %v1153
        %v1191 = vmul.f32 1.0, %v1190
        %v1192 = vrcp.pop %v1154
        %v1193 = vmul.f32 1.0, %v1192
        %v1194 = vrcp.pop %v1155
        %v1195 = vmul.f32 1.0, %v1194
        %v1196 = vrcp.pop %v1156
        %v1197 = vmul.f32 1.0, %v1196
        %v1198 = vrcp.pop %v1157
        %v1199 = vmul.f32 1.0, %v1198
        %v1200 = vrcp.pop %v1158
        %v1201 = vmul.f32 1.0, %v1200
        %v1202 = vrcp.pop %v1159
        %v1203 = vmul.f32 1.0, %v1202
        %v1204 = vrcp.pop %v1160
        %v1205 = vmul.f32 1.0, %v1204
        %v1206 = vrcp.pop %v1161
        %v1207 = vmul.f32 1.0, %v1206
        %v1208 = vrcp.pop %v1162
        %v1209 = vmul.f32 1.0, %v1208
        %v1210 = vrcp.pop %v1163
        %v1211 = vmul.f32 1.0, %v1210
        %v1212 = vrcp.pop %v1164
        %v1213 = vmul.f32 1.0, %v1212
        %v1214 = vrcp.pop %v1165
        %v1215 = vmul.f32 1.0, %v1214
        %v1216 = vrcp.pop %v1166
        %v1217 = vmul.f32 1.0, %v1216
        %v1218 = vrcp.pop %v1167
        %v1219 = vmul.f32 1.0, %v1218
        %v1220 = vrcp.pop %v1168
        %v1221 = vmul.f32 1.0, %v1220
        %v1222 = vrcp.pop %v1169
        %v1223 = vmul.f32 1.0, %v1222
        %v1224 = vrcp.pop %v1170
        %v1225 = vmul.f32 1.0, %v1224
        %v1226 = vrcp.pop %v1171
        %v1227 = vmul.f32 1.0, %v1226
        %v1228 = vrcp.pop %v1172
        %v1229 = vmul.f32 1.0, %v1228
        %v1230 = vrcp.pop %v1173
        %v1231 = vmul.f32 1.0, %v1230
        %v1232 = vrcp.pop %v1174
        %v1233 = vmul.f32 1.0, %v1232
        %v1234 = vrcp.pop %v1175
        %v1235 = vmul.f32 1.0, %v1234
        %v1236 = vrcp.pop %v1176
        %v1237 = vmul.f32 1.0, %v1236
        %v1238 = vrcp.pop %v1177
        %v1239 = vmul.f32 1.0, %v1238
        %v1240 = vrcp.pop %v1178
        %v1241 = vmul.f32 1.0, %v1240
        %v1242 = vrcp.pop %v1179
        %v1243 = vmul.f32 1.0, %v1242
        %v1244 = vpack.c.bf16 %v1197, %v1181
        %v1245 = vpack.c.bf16 %v1199, %v1183
        %v1246 = vpack.c.bf16 %v1201, %v1185
        %v1247 = vpack.c.bf16 %v1203, %v1187
        %v1248 = vpack.c.bf16 %v1205, %v1189
        %v1249 = vpack.c.bf16 %v1207, %v1191
        %v1250 = vpack.c.bf16 %v1209, %v1193
        %v1251 = vpack.c.bf16 %v1211, %v1195
        %v1252 = vpack.c.bf16 %v1229, %v1213
        %v1253 = vpack.c.bf16 %v1231, %v1215
        %v1254 = vpack.c.bf16 %v1233, %v1217
        %v1255 = vpack.c.bf16 %v1235, %v1219
        %v1256 = vpack.c.bf16 %v1237, %v1221
        %v1257 = vpack.c.bf16 %v1239, %v1223
        %v1258 = vpack.c.bf16 %v1241, %v1225
        %v1259 = vpack.c.bf16 %v1243, %v1227
        %v1260 = vld [vmem:[%s3] sm:$0xf]
        %v1261 = vld [vmem:[%s3 + $0x4] sm:$0xf]
        %v1262 = vld [vmem:[%s3 + $0x8] sm:$0xf]
        %v1263 = vld [vmem:[%s3 + $0xc] sm:$0xf]
        %v1264 = vld [vmem:[%s3 + $0x10] sm:$0xf]
        %v1265 = vld [vmem:[%s3 + $0x14] sm:$0xf]
        %v1266 = vld [vmem:[%s3 + $0x18] sm:$0xf]
        %v1267 = vld [vmem:[%s3 + $0x1c] sm:$0xf]
        %v1268 = vld [vmem:[%s4] sm:$0xff]
        %v1269 = vld [vmem:[%s4 + $0x8] sm:$0xff]
        %v1270 = vld [vmem:[%s4 + $0x10] sm:$0xff]
        %v1271 = vld [vmem:[%s4 + $0x18] sm:$0xff]
        %v1272 = vld [vmem:[%s4 + $0x20] sm:$0xff]
        %v1273 = vld [vmem:[%s4 + $0x28] sm:$0xff]
        %v1274 = vld [vmem:[%s4 + $0x30] sm:$0xff]
        %v1275 = vld [vmem:[%s4 + $0x38] sm:$0xff]
        %1277 = vset.pattern.permute.xlu0 0
        %1278 = vperm.xlu0 %1277, %v1268
        %v1279 = vpop.permute.xlu0 %1278
        %1282 = vset.pattern.permute.xlu0 0
        %1283 = vperm.xlu0 %1282, %v1269
        %v1284 = vpop.permute.xlu0 %1283
        %1287 = vset.pattern.permute.xlu0 0
        %1288 = vperm.xlu0 %1287, %v1270
        %v1289 = vpop.permute.xlu0 %1288
        %1292 = vset.pattern.permute.xlu0 0
        %1293 = vperm.xlu0 %1292, %v1271
        %v1294 = vpop.permute.xlu0 %1293
        %1297 = vset.pattern.permute.xlu0 0
        %1298 = vperm.xlu0 %1297, %v1272
        %v1299 = vpop.permute.xlu0 %1298
        %1302 = vset.pattern.permute.xlu0 0
        %1303 = vperm.xlu0 %1302, %v1273
        %v1304 = vpop.permute.xlu0 %1303
        %1307 = vset.pattern.permute.xlu0 0
        %1308 = vperm.xlu0 %1307, %v1274
        %v1309 = vpop.permute.xlu0 %1308
        %1312 = vset.pattern.permute.xlu0 0
        %1313 = vperm.xlu0 %1312, %v1275
        %v1314 = vpop.permute.xlu0 %1313
        %v1324 = vunpack.c.l.b16 %v1260
        %v1325 = vunpack.c.l.b16 %v1261
        %v1326 = vunpack.c.l.b16 %v1262
        %v1327 = vunpack.c.l.b16 %v1263
        %v1328 = vunpack.c.l.b16 %v1264
        %v1329 = vunpack.c.l.b16 %v1265
        %v1330 = vunpack.c.l.b16 %v1266
        %v1331 = vunpack.c.l.b16 %v1267
        %v1332 = vpack.c.b16 %v1325, %v1324
        %v1333 = vpack.c.b16 %v1327, %v1326
        %v1334 = vpack.c.b16 %v1329, %v1328
        %v1335 = vpack.c.b16 %v1331, %v1330
        %v1337 = vsel %vm641, %v1332, 0
        %v1340 = vsel %vm641, %v1333, 0
        %v1343 = vsel %vm641, %v1334, 0
        %v1346 = vsel %vm641, %v1335, 0
        %1348 = vmatprep.subr.bf16.mxu0 %v1245
        %1349 = vmatpush1.bf16.msra.mxu0 %v1244
        %1350 = vmatprep.subr.bf16.mxu0 %v1253
        %1351 = vmatpush1.bf16.msra.mxu0 %v1252
        %1352 = vmatprep.subr.bf16.mxu0 0
        %1353 = vmatpush1.bf16.msra.mxu0 0
        %1354 = vmatprep.subr.bf16.mxu0 0
        %1355 = vmatpush1.bf16.msra.mxu0 0
        %1356 = vmatprep.subr.bf16.mxu0 0
        %1357 = vmatpush1.bf16.msra.mxu0 0
        %1358 = vmatprep.subr.bf16.mxu0 0
        %1359 = vmatpush1.bf16.msra.mxu0 0
        %1360 = vmatprep.subr.bf16.mxu0 0
        %1361 = vmatpush1.bf16.msra.mxu0 0
        %1362 = vmatprep.subr.bf16.mxu0 0
        %1363 = vmatpush1.bf16.msra.mxu0 0
        %1364 = vmatprep.subr.bf16.mxu0 0
        %1365 = vmatpush1.bf16.msra.mxu0 0
        %1366 = vmatprep.subr.bf16.mxu0 0
        %1367 = vmatpush1.bf16.msra.mxu0 0
        %1368 = vmatprep.subr.bf16.mxu0 0
        %1369 = vmatpush1.bf16.msra.mxu0 0
        %1370 = vmatprep.subr.bf16.mxu0 0
        %1371 = vmatpush1.bf16.msra.mxu0 0
        %1372 = vmatprep.subr.bf16.mxu0 0
        %1373 = vmatpush1.bf16.msra.mxu0 0
        %1374 = vmatprep.subr.bf16.mxu0 0
        %1375 = vmatpush1.bf16.msra.mxu0 0
        %1376 = vmatprep.subr.bf16.mxu0 0
        %1377 = vmatpush1.bf16.msra.mxu0 0
        %1378 = vmatprep.subr.bf16.mxu0 0
        %1379 = vmatpush1.bf16.msra.mxu0 0
        %1380 = vmatprep.mubr.bf16.mxu0 0
        %1381 = vmatmul.mubr.bf16.gmra.mrb[0].mxu0 %v1337
        %v1382 = vpop.f32.mrb[0].mxu0
        %v1383 = vadd.f32 %v1279, %v1382
        %v1384 = vpop.f32.mrb[0].mxu0
        %v1385 = vadd.f32 %v1279, %v1384
        %v1386 = vpop.f32.mrb[0].mxu0
        %v1387 = vadd.f32 %v1284, %v1386
        %v1388 = vpop.f32.mrb[0].mxu0
        %v1389 = vadd.f32 %v1284, %v1388
        %1390 = vmatprep.mubr.bf16.mxu0 0
        %1391 = vmatmul.mubr.bf16.gmra.mrb[0].mxu0 %v1340
        %v1392 = vpop.f32.mrb[0].mxu0
        %v1393 = vadd.f32 %v1289, %v1392
        %v1394 = vpop.f32.mrb[0].mxu0
        %v1395 = vadd.f32 %v1289, %v1394
        %v1396 = vpop.f32.mrb[0].mxu0
        %v1397 = vadd.f32 %v1294, %v1396
        %v1398 = vpop.f32.mrb[0].mxu0
        %v1399 = vadd.f32 %v1294, %v1398
        %1400 = vmatprep.mubr.bf16.mxu0 0
        %1401 = vmatmul.mubr.bf16.gmra.mrb[0].mxu0 %v1343
        %v1402 = vpop.f32.mrb[0].mxu0
        %v1403 = vadd.f32 %v1299, %v1402
        %v1404 = vpop.f32.mrb[0].mxu0
        %v1405 = vadd.f32 %v1299, %v1404
        %v1406 = vpop.f32.mrb[0].mxu0
        %v1407 = vadd.f32 %v1304, %v1406
        %v1408 = vpop.f32.mrb[0].mxu0
        %v1409 = vadd.f32 %v1304, %v1408
        %1410 = vmatprep.mubr.bf16.mxu0 0
        %1411 = vmatmul.mubr.bf16.gmra.mrb[0].mxu0 %v1346
        %v1412 = vpop.f32.mrb[0].mxu0
        %v1413 = vadd.f32 %v1309, %v1412
        %v1414 = vpop.f32.mrb[0].mxu0
        %v1415 = vadd.f32 %v1309, %v1414
        %v1416 = vpop.f32.mrb[0].mxu0
        %v1417 = vadd.f32 %v1314, %v1416
        %v1418 = vpop.f32.mrb[0].mxu0
        %v1419 = vadd.f32 %v1314, %v1418
        %1420 = vdwg.mxu0
        %1421 = vmatprep.subr.bf16.mxu0 %v1247
        %1422 = vmatpush1.bf16.msra.mxu0 %v1246
        %1423 = vmatprep.subr.bf16.mxu0 %v1255
        %1424 = vmatpush1.bf16.msra.mxu0 %v1254
        %1425 = vmatprep.subr.bf16.mxu0 0
        %1426 = vmatpush1.bf16.msra.mxu0 0
        %1427 = vmatprep.subr.bf16.mxu0 0
        %1428 = vmatpush1.bf16.msra.mxu0 0
        %1429 = vmatprep.subr.bf16.mxu0 0
        %1430 = vmatpush1.bf16.msra.mxu0 0
        %1431 = vmatprep.subr.bf16.mxu0 0
        %1432 = vmatpush1.bf16.msra.mxu0 0
        %1433 = vmatprep.subr.bf16.mxu0 0
        %1434 = vmatpush1.bf16.msra.mxu0 0
        %1435 = vmatprep.subr.bf16.mxu0 0
        %1436 = vmatpush1.bf16.msra.mxu0 0
        %1437 = vmatprep.subr.bf16.mxu0 0
        %1438 = vmatpush1.bf16.msra.mxu0 0
        %1439 = vmatprep.subr.bf16.mxu0 0
        %1440 = vmatpush1.bf16.msra.mxu0 0
        %1441 = vmatprep.subr.bf16.mxu0 0
        %1442 = vmatpush1.bf16.msra.mxu0 0
        %1443 = vmatprep.subr.bf16.mxu0 0
        %1444 = vmatpush1.bf16.msra.mxu0 0
        %1445 = vmatprep.subr.bf16.mxu0 0
        %1446 = vmatpush1.bf16.msra.mxu0 0
        %1447 = vmatprep.subr.bf16.mxu0 0
        %1448 = vmatpush1.bf16.msra.mxu0 0
        %1449 = vmatprep.subr.bf16.mxu0 0
        %1450 = vmatpush1.bf16.msra.mxu0 0
        %1451 = vmatprep.subr.bf16.mxu0 0
        %1452 = vmatpush1.bf16.msra.mxu0 0
        %1453 = vmatprep.mubr.bf16.mxu0 0
        %1454 = vmatmul.mubr.bf16.gmra.mrb[0].mxu0 %v1337
        %v1455 = vpop.f32.mrb[0].mxu0
        %v1456 = vadd.f32 %v1279, %v1455
        %v1457 = vpop.f32.mrb[0].mxu0
        %v1458 = vadd.f32 %v1279, %v1457
        %v1459 = vpop.f32.mrb[0].mxu0
        %v1460 = vadd.f32 %v1284, %v1459
        %v1461 = vpop.f32.mrb[0].mxu0
        %v1462 = vadd.f32 %v1284, %v1461
        %1463 = vmatprep.mubr.bf16.mxu0 0
        %1464 = vmatmul.mubr.bf16.gmra.mrb[0].mxu0 %v1340
        %v1465 = vpop.f32.mrb[0].mxu0
        %v1466 = vadd.f32 %v1289, %v1465
        %v1467 = vpop.f32.mrb[0].mxu0
        %v1468 = vadd.f32 %v1289, %v1467
        %v1469 = vpop.f32.mrb[0].mxu0
        %v1470 = vadd.f32 %v1294, %v1469
        %v1471 = vpop.f32.mrb[0].mxu0
        %v1472 = vadd.f32 %v1294, %v1471
        %1473 = vmatprep.mubr.bf16.mxu0 0
        %1474 = vmatmul.mubr.bf16.gmra.mrb[0].mxu0 %v1343
        %v1475 = vpop.f32.mrb[0].mxu0
        %v1476 = vadd.f32 %v1299, %v1475
        %v1477 = vpop.f32.mrb[0].mxu0
        %v1478 = vadd.f32 %v1299, %v1477
        %v1479 = vpop.f32.mrb[0].mxu0
        %v1480 = vadd.f32 %v1304, %v1479
        %v1481 = vpop.f32.mrb[0].mxu0
        %v1482 = vadd.f32 %v1304, %v1481
        %1483 = vmatprep.mubr.bf16.mxu0 0
        %1484 = vmatmul.mubr.bf16.gmra.mrb[0].mxu0 %v1346
        %v1485 = vpop.f32.mrb[0].mxu0
        %v1486 = vadd.f32 %v1309, %v1485
        %v1487 = vpop.f32.mrb[0].mxu0
        %v1488 = vadd.f32 %v1309, %v1487
        %v1489 = vpop.f32.mrb[0].mxu0
        %v1490 = vadd.f32 %v1314, %v1489
        %v1491 = vpop.f32.mrb[0].mxu0
        %v1492 = vadd.f32 %v1314, %v1491
        %1493 = vdwg.mxu0
        %1494 = vmatprep.subr.bf16.mxu0 %v1249
        %1495 = vmatpush1.bf16.msra.mxu0 %v1248
        %1496 = vmatprep.subr.bf16.mxu0 %v1257
        %1497 = vmatpush1.bf16.msra.mxu0 %v1256
        %1498 = vmatprep.subr.bf16.mxu0 0
        %1499 = vmatpush1.bf16.msra.mxu0 0
        %1500 = vmatprep.subr.bf16.mxu0 0
        %1501 = vmatpush1.bf16.msra.mxu0 0
        %1502 = vmatprep.subr.bf16.mxu0 0
        %1503 = vmatpush1.bf16.msra.mxu0 0
        %1504 = vmatprep.subr.bf16.mxu0 0
        %1505 = vmatpush1.bf16.msra.mxu0 0
        %1506 = vmatprep.subr.bf16.mxu0 0
        %1507 = vmatpush1.bf16.msra.mxu0 0
        %1508 = vmatprep.subr.bf16.mxu0 0
        %1509 = vmatpush1.bf16.msra.mxu0 0
        %1510 = vmatprep.subr.bf16.mxu0 0
        %1511 = vmatpush1.bf16.msra.mxu0 0
        %1512 = vmatprep.subr.bf16.mxu0 0
        %1513 = vmatpush1.bf16.msra.mxu0 0
        %1514 = vmatprep.subr.bf16.mxu0 0
        %1515 = vmatpush1.bf16.msra.mxu0 0
        %1516 = vmatprep.subr.bf16.mxu0 0
        %1517 = vmatpush1.bf16.msra.mxu0 0
        %1518 = vmatprep.subr.bf16.mxu0 0
        %1519 = vmatpush1.bf16.msra.mxu0 0
        %1520 = vmatprep.subr.bf16.mxu0 0
        %1521 = vmatpush1.bf16.msra.mxu0 0
        %1522 = vmatprep.subr.bf16.mxu0 0
        %1523 = vmatpush1.bf16.msra.mxu0 0
        %1524 = vmatprep.subr.bf16.mxu0 0
        %1525 = vmatpush1.bf16.msra.mxu0 0
        %1526 = vmatprep.mubr.bf16.mxu0 0
        %1527 = vmatmul.mubr.bf16.gmra.mrb[0].mxu0 %v1337
        %v1528 = vpop.f32.mrb[0].mxu0
        %v1529 = vadd.f32 %v1279, %v1528
        %v1530 = vpop.f32.mrb[0].mxu0
        %v1531 = vadd.f32 %v1279, %v1530
        %v1532 = vpop.f32.mrb[0].mxu0
        %v1533 = vadd.f32 %v1284, %v1532
        %v1534 = vpop.f32.mrb[0].mxu0
        %v1535 = vadd.f32 %v1284, %v1534
        %1536 = vmatprep.mubr.bf16.mxu0 0
        %1537 = vmatmul.mubr.bf16.gmra.mrb[0].mxu0 %v1340
        %v1538 = vpop.f32.mrb[0].mxu0
        %v1539 = vadd.f32 %v1289, %v1538
        %v1540 = vpop.f32.mrb[0].mxu0
        %v1541 = vadd.f32 %v1289, %v1540
        %v1542 = vpop.f32.mrb[0].mxu0
        %v1543 = vadd.f32 %v1294, %v1542
        %v1544 = vpop.f32.mrb[0].mxu0
        %v1545 = vadd.f32 %v1294, %v1544
        %1546 = vmatprep.mubr.bf16.mxu0 0
        %1547 = vmatmul.mubr.bf16.gmra.mrb[0].mxu0 %v1343
        %v1548 = vpop.f32.mrb[0].mxu0
        %v1549 = vadd.f32 %v1299, %v1548
        %v1550 = vpop.f32.mrb[0].mxu0
        %v1551 = vadd.f32 %v1299, %v1550
        %v1552 = vpop.f32.mrb[0].mxu0
        %v1553 = vadd.f32 %v1304, %v1552
        %v1554 = vpop.f32.mrb[0].mxu0
        %v1555 = vadd.f32 %v1304, %v1554
        %1556 = vmatprep.mubr.bf16.mxu0 0
        %1557 = vmatmul.mubr.bf16.gmra.mrb[0].mxu0 %v1346
        %v1558 = vpop.f32.mrb[0].mxu0
        %v1559 = vadd.f32 %v1309, %v1558
        %v1560 = vpop.f32.mrb[0].mxu0
        %v1561 = vadd.f32 %v1309, %v1560
        %v1562 = vpop.f32.mrb[0].mxu0
        %v1563 = vadd.f32 %v1314, %v1562
        %v1564 = vpop.f32.mrb[0].mxu0
        %v1565 = vadd.f32 %v1314, %v1564
        %1566 = vdwg.mxu0
        %1567 = vmatprep.subr.bf16.mxu0 %v1251
        %1568 = vmatpush1.bf16.msra.mxu0 %v1250
        %1569 = vmatprep.subr.bf16.mxu0 %v1259
        %1570 = vmatpush1.bf16.msra.mxu0 %v1258
        %1571 = vmatprep.subr.bf16.mxu0 0
        %1572 = vmatpush1.bf16.msra.mxu0 0
        %1573 = vmatprep.subr.bf16.mxu0 0
        %1574 = vmatpush1.bf16.msra.mxu0 0
        %1575 = vmatprep.subr.bf16.mxu0 0
        %1576 = vmatpush1.bf16.msra.mxu0 0
        %1577 = vmatprep.subr.bf16.mxu0 0
        %1578 = vmatpush1.bf16.msra.mxu0 0
        %1579 = vmatprep.subr.bf16.mxu0 0
        %1580 = vmatpush1.bf16.msra.mxu0 0
        %1581 = vmatprep.subr.bf16.mxu0 0
        %1582 = vmatpush1.bf16.msra.mxu0 0
        %1583 = vmatprep.subr.bf16.mxu0 0
        %1584 = vmatpush1.bf16.msra.mxu0 0
        %1585 = vmatprep.subr.bf16.mxu0 0
        %1586 = vmatpush1.bf16.msra.mxu0 0
        %1587 = vmatprep.subr.bf16.mxu0 0
        %1588 = vmatpush1.bf16.msra.mxu0 0
        %1589 = vmatprep.subr.bf16.mxu0 0
        %1590 = vmatpush1.bf16.msra.mxu0 0
        %1591 = vmatprep.subr.bf16.mxu0 0
        %1592 = vmatpush1.bf16.msra.mxu0 0
        %1593 = vmatprep.subr.bf16.mxu0 0
        %1594 = vmatpush1.bf16.msra.mxu0 0
        %1595 = vmatprep.subr.bf16.mxu0 0
        %1596 = vmatpush1.bf16.msra.mxu0 0
        %1597 = vmatprep.subr.bf16.mxu0 0
        %1598 = vmatpush1.bf16.msra.mxu0 0
        %1599 = vmatprep.mubr.bf16.mxu0 0
        %1600 = vmatmul.mubr.bf16.gmra.mrb[0].mxu0 %v1337
        %v1601 = vpop.f32.mrb[0].mxu0
        %v1602 = vadd.f32 %v1279, %v1601
        %v1603 = vpop.f32.mrb[0].mxu0
        %v1604 = vadd.f32 %v1279, %v1603
        %v1605 = vpop.f32.mrb[0].mxu0
        %v1606 = vadd.f32 %v1284, %v1605
        %v1607 = vpop.f32.mrb[0].mxu0
        %v1608 = vadd.f32 %v1284, %v1607
        %1609 = vmatprep.mubr.bf16.mxu0 0
        %1610 = vmatmul.mubr.bf16.gmra.mrb[0].mxu0 %v1340
        %v1611 = vpop.f32.mrb[0].mxu0
        %v1612 = vadd.f32 %v1289, %v1611
        %v1613 = vpop.f32.mrb[0].mxu0
        %v1614 = vadd.f32 %v1289, %v1613
        %v1615 = vpop.f32.mrb[0].mxu0
        %v1616 = vadd.f32 %v1294, %v1615
        %v1617 = vpop.f32.mrb[0].mxu0
        %v1618 = vadd.f32 %v1294, %v1617
        %1619 = vmatprep.mubr.bf16.mxu0 0
        %1620 = vmatmul.mubr.bf16.gmra.mrb[0].mxu0 %v1343
        %v1621 = vpop.f32.mrb[0].mxu0
        %v1622 = vadd.f32 %v1299, %v1621
        %v1623 = vpop.f32.mrb[0].mxu0
        %v1624 = vadd.f32 %v1299, %v1623
        %v1625 = vpop.f32.mrb[0].mxu0
        %v1626 = vadd.f32 %v1304, %v1625
        %v1627 = vpop.f32.mrb[0].mxu0
        %v1628 = vadd.f32 %v1304, %v1627
        %1629 = vmatprep.mubr.bf16.mxu0 0
        %1630 = vmatmul.mubr.bf16.gmra.mrb[0].mxu0 %v1346
        %v1631 = vpop.f32.mrb[0].mxu0
        %v1632 = vadd.f32 %v1309, %v1631
        %v1633 = vpop.f32.mrb[0].mxu0
        %v1634 = vadd.f32 %v1309, %v1633
        %v1635 = vpop.f32.mrb[0].mxu0
        %v1636 = vadd.f32 %v1314, %v1635
        %v1637 = vpop.f32.mrb[0].mxu0
        %v1638 = vadd.f32 %v1314, %v1637
        %1639 = vdwg.mxu0
        %v1640 = vxor.u32 %v1383, 2147483648
        %v1641 = vxor.u32 %v1385, 2147483648
        %v1642 = vxor.u32 %v1456, 2147483648
        %v1643 = vxor.u32 %v1458, 2147483648
        %v1644 = vxor.u32 %v1529, 2147483648
        %v1645 = vxor.u32 %v1531, 2147483648
        %v1646 = vxor.u32 %v1602, 2147483648
        %v1647 = vxor.u32 %v1604, 2147483648
        %v1648 = vxor.u32 %v1387, 2147483648
        %v1649 = vxor.u32 %v1389, 2147483648
        %v1650 = vxor.u32 %v1460, 2147483648
        %v1651 = vxor.u32 %v1462, 2147483648
        %v1652 = vxor.u32 %v1533, 2147483648
        %v1653 = vxor.u32 %v1535, 2147483648
        %v1654 = vxor.u32 %v1606, 2147483648
        %v1655 = vxor.u32 %v1608, 2147483648
        %v1656 = vxor.u32 %v1393, 2147483648
        %v1657 = vxor.u32 %v1395, 2147483648
        %v1658 = vxor.u32 %v1466, 2147483648
        %v1659 = vxor.u32 %v1468, 2147483648
        %v1660 = vxor.u32 %v1539, 2147483648
        %v1661 = vxor.u32 %v1541, 2147483648
        %v1662 = vxor.u32 %v1612, 2147483648
        %v1663 = vxor.u32 %v1614, 2147483648
        %v1664 = vxor.u32 %v1397, 2147483648
        %v1665 = vxor.u32 %v1399, 2147483648
        %v1666 = vxor.u32 %v1470, 2147483648
        %v1667 = vxor.u32 %v1472, 2147483648
        %v1668 = vxor.u32 %v1543, 2147483648
        %v1669 = vxor.u32 %v1545, 2147483648
        %v1670 = vxor.u32 %v1616, 2147483648
        %v1671 = vxor.u32 %v1618, 2147483648
        %v1672 = vxor.u32 %v1403, 2147483648
        %v1673 = vxor.u32 %v1405, 2147483648
        %v1674 = vxor.u32 %v1476, 2147483648
        %v1675 = vxor.u32 %v1478, 2147483648
        %v1676 = vxor.u32 %v1549, 2147483648
        %v1677 = vxor.u32 %v1551, 2147483648
        %v1678 = vxor.u32 %v1622, 2147483648
        %v1679 = vxor.u32 %v1624, 2147483648
        %v1680 = vxor.u32 %v1407, 2147483648
        %v1681 = vxor.u32 %v1409, 2147483648
        %v1682 = vxor.u32 %v1480, 2147483648
        %v1683 = vxor.u32 %v1482, 2147483648
        %v1684 = vxor.u32 %v1553, 2147483648
        %v1685 = vxor.u32 %v1555, 2147483648
        %v1686 = vxor.u32 %v1626, 2147483648
        %v1687 = vxor.u32 %v1628, 2147483648
        %v1688 = vxor.u32 %v1413, 2147483648
        %v1689 = vxor.u32 %v1415, 2147483648
        %v1690 = vxor.u32 %v1486, 2147483648
        %v1691 = vxor.u32 %v1488, 2147483648
        %v1692 = vxor.u32 %v1559, 2147483648
        %v1693 = vxor.u32 %v1561, 2147483648
        %v1694 = vxor.u32 %v1632, 2147483648
        %v1695 = vxor.u32 %v1634, 2147483648
        %v1696 = vxor.u32 %v1417, 2147483648
        %v1697 = vxor.u32 %v1419, 2147483648
        %v1698 = vxor.u32 %v1490, 2147483648
        %v1699 = vxor.u32 %v1492, 2147483648
        %v1700 = vxor.u32 %v1563, 2147483648
        %v1701 = vxor.u32 %v1565, 2147483648
        %v1702 = vxor.u32 %v1636, 2147483648
        %v1703 = vxor.u32 %v1638, 2147483648
        %v1704 = vmul.f32 %v1640, 1.442695
        %v1705 = vpow.pop %v1704
        %v1706 = vmul.f32 %v1641, 1.442695
        %v1707 = vpow.pop %v1706
        %v1708 = vmul.f32 %v1642, 1.442695
        %v1709 = vpow.pop %v1708
        %v1710 = vmul.f32 %v1643, 1.442695
        %v1711 = vpow.pop %v1710
        %v1712 = vmul.f32 %v1644, 1.442695
        %v1713 = vpow.pop %v1712
        %v1714 = vmul.f32 %v1645, 1.442695
        %v1715 = vpow.pop %v1714
        %v1716 = vmul.f32 %v1646, 1.442695
        %v1717 = vpow.pop %v1716
        %v1718 = vmul.f32 %v1647, 1.442695
        %v1719 = vpow.pop %v1718
        %v1720 = vmul.f32 %v1648, 1.442695
        %v1721 = vpow.pop %v1720
        %v1722 = vmul.f32 %v1649, 1.442695
        %v1723 = vpow.pop %v1722
        %v1724 = vmul.f32 %v1650, 1.442695
        %v1725 = vpow.pop %v1724
        %v1726 = vmul.f32 %v1651, 1.442695
        %v1727 = vpow.pop %v1726
        %v1728 = vmul.f32 %v1652, 1.442695
        %v1729 = vpow.pop %v1728
        %v1730 = vmul.f32 %v1653, 1.442695
        %v1731 = vpow.pop %v1730
        %v1732 = vmul.f32 %v1654, 1.442695
        %v1733 = vpow.pop %v1732
        %v1734 = vmul.f32 %v1655, 1.442695
        %v1735 = vpow.pop %v1734
        %v1736 = vmul.f32 %v1656, 1.442695
        %v1737 = vpow.pop %v1736
        %v1738 = vmul.f32 %v1657, 1.442695
        %v1739 = vpow.pop %v1738
        %v1740 = vmul.f32 %v1658, 1.442695
        %v1741 = vpow.pop %v1740
        %v1742 = vmul.f32 %v1659, 1.442695
        %v1743 = vpow.pop %v1742
        %v1744 = vmul.f32 %v1660, 1.442695
        %v1745 = vpow.pop %v1744
        %v1746 = vmul.f32 %v1661, 1.442695
        %v1747 = vpow.pop %v1746
        %v1748 = vmul.f32 %v1662, 1.442695
        %v1749 = vpow.pop %v1748
        %v1750 = vmul.f32 %v1663, 1.442695
        %v1751 = vpow.pop %v1750
        %v1752 = vmul.f32 %v1664, 1.442695
        %v1753 = vpow.pop %v1752
        %v1754 = vmul.f32 %v1665, 1.442695
        %v1755 = vpow.pop %v1754
        %v1756 = vmul.f32 %v1666, 1.442695
        %v1757 = vpow.pop %v1756
        %v1758 = vmul.f32 %v1667, 1.442695
        %v1759 = vpow.pop %v1758
        %v1760 = vmul.f32 %v1668, 1.442695
        %v1761 = vpow.pop %v1760
        %v1762 = vmul.f32 %v1669, 1.442695
        %v1763 = vpow.pop %v1762
        %v1764 = vmul.f32 %v1670, 1.442695
        %v1765 = vpow.pop %v1764
        %v1766 = vmul.f32 %v1671, 1.442695
        %v1767 = vpow.pop %v1766
        %v1768 = vmul.f32 %v1672, 1.442695
        %v1769 = vpow.pop %v1768
        %v1770 = vmul.f32 %v1673, 1.442695
        %v1771 = vpow.pop %v1770
        %v1772 = vmul.f32 %v1674, 1.442695
        %v1773 = vpow.pop %v1772
        %v1774 = vmul.f32 %v1675, 1.442695
        %v1775 = vpow.pop %v1774
        %v1776 = vmul.f32 %v1676, 1.442695
        %v1777 = vpow.pop %v1776
        %v1778 = vmul.f32 %v1677, 1.442695
        %v1779 = vpow.pop %v1778
        %v1780 = vmul.f32 %v1678, 1.442695
        %v1781 = vpow.pop %v1780
        %v1782 = vmul.f32 %v1679, 1.442695
        %v1783 = vpow.pop %v1782
        %v1784 = vmul.f32 %v1680, 1.442695
        %v1785 = vpow.pop %v1784
        %v1786 = vmul.f32 %v1681, 1.442695
        %v1787 = vpow.pop %v1786
        %v1788 = vmul.f32 %v1682, 1.442695
        %v1789 = vpow.pop %v1788
        %v1790 = vmul.f32 %v1683, 1.442695
        %v1791 = vpow.pop %v1790
        %v1792 = vmul.f32 %v1684, 1.442695
        %v1793 = vpow.pop %v1792
        %v1794 = vmul.f32 %v1685, 1.442695
        %v1795 = vpow.pop %v1794
        %v1796 = vmul.f32 %v1686, 1.442695
        %v1797 = vpow.pop %v1796
        %v1798 = vmul.f32 %v1687, 1.442695
        %v1799 = vpow.pop %v1798
        %v1800 = vmul.f32 %v1688, 1.442695
        %v1801 = vpow.pop %v1800
        %v1802 = vmul.f32 %v1689, 1.442695
        %v1803 = vpow.pop %v1802
        %v1804 = vmul.f32 %v1690, 1.442695
        %v1805 = vpow.pop %v1804
        %v1806 = vmul.f32 %v1691, 1.442695
        %v1807 = vpow.pop %v1806
        %v1808 = vmul.f32 %v1692, 1.442695
        %v1809 = vpow.pop %v1808
        %v1810 = vmul.f32 %v1693, 1.442695
        %v1811 = vpow.pop %v1810
        %v1812 = vmul.f32 %v1694, 1.442695
        %v1813 = vpow.pop %v1812
        %v1814 = vmul.f32 %v1695, 1.442695
        %v1815 = vpow.pop %v1814
        %v1816 = vmul.f32 %v1696, 1.442695
        %v1817 = vpow.pop %v1816
        %v1818 = vmul.f32 %v1697, 1.442695
        %v1819 = vpow.pop %v1818
        %v1820 = vmul.f32 %v1698, 1.442695
        %v1821 = vpow.pop %v1820
        %v1822 = vmul.f32 %v1699, 1.442695
        %v1823 = vpow.pop %v1822
        %v1824 = vmul.f32 %v1700, 1.442695
        %v1825 = vpow.pop %v1824
        %v1826 = vmul.f32 %v1701, 1.442695
        %v1827 = vpow.pop %v1826
        %v1828 = vmul.f32 %v1702, 1.442695
        %v1829 = vpow.pop %v1828
        %v1830 = vmul.f32 %v1703, 1.442695
        %v1831 = vpow.pop %v1830
        %v1832 = vadd.f32 %v1705, 1.0
        %v1833 = vadd.f32 %v1707, 1.0
        %v1834 = vadd.f32 %v1709, 1.0
        %v1835 = vadd.f32 %v1711, 1.0
        %v1836 = vadd.f32 %v1713, 1.0
        %v1837 = vadd.f32 %v1715, 1.0
        %v1838 = vadd.f32 %v1717, 1.0
        %v1839 = vadd.f32 %v1719, 1.0
        %v1840 = vadd.f32 %v1721, 1.0
        %v1841 = vadd.f32 %v1723, 1.0
        %v1842 = vadd.f32 %v1725, 1.0
        %v1843 = vadd.f32 %v1727, 1.0
        %v1844 = vadd.f32 %v1729, 1.0
        %v1845 = vadd.f32 %v1731, 1.0
        %v1846 = vadd.f32 %v1733, 1.0
        %v1847 = vadd.f32 %v1735, 1.0
        %v1848 = vadd.f32 %v1737, 1.0
        %v1849 = vadd.f32 %v1739, 1.0
        %v1850 = vadd.f32 %v1741, 1.0
        %v1851 = vadd.f32 %v1743, 1.0
        %v1852 = vadd.f32 %v1745, 1.0
        %v1853 = vadd.f32 %v1747, 1.0
        %v1854 = vadd.f32 %v1749, 1.0
        %v1855 = vadd.f32 %v1751, 1.0
        %v1856 = vadd.f32 %v1753, 1.0
        %v1857 = vadd.f32 %v1755, 1.0
        %v1858 = vadd.f32 %v1757, 1.0
        %v1859 = vadd.f32 %v1759, 1.0
        %v1860 = vadd.f32 %v1761, 1.0
        %v1861 = vadd.f32 %v1763, 1.0
        %v1862 = vadd.f32 %v1765, 1.0
        %v1863 = vadd.f32 %v1767, 1.0
        %v1864 = vadd.f32 %v1769, 1.0
        %v1865 = vadd.f32 %v1771, 1.0
        %v1866 = vadd.f32 %v1773, 1.0
        %v1867 = vadd.f32 %v1775, 1.0
        %v1868 = vadd.f32 %v1777, 1.0
        %v1869 = vadd.f32 %v1779, 1.0
        %v1870 = vadd.f32 %v1781, 1.0
        %v1871 = vadd.f32 %v1783, 1.0
        %v1872 = vadd.f32 %v1785, 1.0
        %v1873 = vadd.f32 %v1787, 1.0
        %v1874 = vadd.f32 %v1789, 1.0
        %v1875 = vadd.f32 %v1791, 1.0
        %v1876 = vadd.f32 %v1793, 1.0
        %v1877 = vadd.f32 %v1795, 1.0
        %v1878 = vadd.f32 %v1797, 1.0
        %v1879 = vadd.f32 %v1799, 1.0
        %v1880 = vadd.f32 %v1801, 1.0
        %v1881 = vadd.f32 %v1803, 1.0
        %v1882 = vadd.f32 %v1805, 1.0
        %v1883 = vadd.f32 %v1807, 1.0
        %v1884 = vadd.f32 %v1809, 1.0
        %v1885 = vadd.f32 %v1811, 1.0
        %v1886 = vadd.f32 %v1813, 1.0
        %v1887 = vadd.f32 %v1815, 1.0
        %v1888 = vadd.f32 %v1817, 1.0
        %v1889 = vadd.f32 %v1819, 1.0
        %v1890 = vadd.f32 %v1821, 1.0
        %v1891 = vadd.f32 %v1823, 1.0
        %v1892 = vadd.f32 %v1825, 1.0
        %v1893 = vadd.f32 %v1827, 1.0
        %v1894 = vadd.f32 %v1829, 1.0
        %v1895 = vadd.f32 %v1831, 1.0
        %v1896 = vrcp.pop %v1832
        %v1897 = vmul.f32 1.0, %v1896
        %v1898 = vrcp.pop %v1833
        %v1899 = vmul.f32 1.0, %v1898
        %v1900 = vrcp.pop %v1834
        %v1901 = vmul.f32 1.0, %v1900
        %v1902 = vrcp.pop %v1835
        %v1903 = vmul.f32 1.0, %v1902
        %v1904 = vrcp.pop %v1836
        %v1905 = vmul.f32 1.0, %v1904
        %v1906 = vrcp.pop %v1837
        %v1907 = vmul.f32 1.0, %v1906
        %v1908 = vrcp.pop %v1838
        %v1909 = vmul.f32 1.0, %v1908
        %v1910 = vrcp.pop %v1839
        %v1911 = vmul.f32 1.0, %v1910
        %v1912 = vrcp.pop %v1840
        %v1913 = vmul.f32 1.0, %v1912
        %v1914 = vrcp.pop %v1841
        %v1915 = vmul.f32 1.0, %v1914
        %v1916 = vrcp.pop %v1842
        %v1917 = vmul.f32 1.0, %v1916
        %v1918 = vrcp.pop %v1843
        %v1919 = vmul.f32 1.0, %v1918
        %v1920 = vrcp.pop %v1844
        %v1921 = vmul.f32 1.0, %v1920
        %v1922 = vrcp.pop %v1845
        %v1923 = vmul.f32 1.0, %v1922
        %v1924 = vrcp.pop %v1846
        %v1925 = vmul.f32 1.0, %v1924
        %v1926 = vrcp.pop %v1847
        %v1927 = vmul.f32 1.0, %v1926
        %v1928 = vrcp.pop %v1848
        %v1929 = vmul.f32 1.0, %v1928
        %v1930 = vrcp.pop %v1849
        %v1931 = vmul.f32 1.0, %v1930
        %v1932 = vrcp.pop %v1850
        %v1933 = vmul.f32 1.0, %v1932
        %v1934 = vrcp.pop %v1851
        %v1935 = vmul.f32 1.0, %v1934
        %v1936 = vrcp.pop %v1852
        %v1937 = vmul.f32 1.0, %v1936
        %v1938 = vrcp.pop %v1853
        %v1939 = vmul.f32 1.0, %v1938
        %v1940 = vrcp.pop %v1854
        %v1941 = vmul.f32 1.0, %v1940
        %v1942 = vrcp.pop %v1855
        %v1943 = vmul.f32 1.0, %v1942
        %v1944 = vrcp.pop %v1856
        %v1945 = vmul.f32 1.0, %v1944
        %v1946 = vrcp.pop %v1857
        %v1947 = vmul.f32 1.0, %v1946
        %v1948 = vrcp.pop %v1858
        %v1949 = vmul.f32 1.0, %v1948
        %v1950 = vrcp.pop %v1859
        %v1951 = vmul.f32 1.0, %v1950
        %v1952 = vrcp.pop %v1860
        %v1953 = vmul.f32 1.0, %v1952
        %v1954 = vrcp.pop %v1861
        %v1955 = vmul.f32 1.0, %v1954
        %v1956 = vrcp.pop %v1862
        %v1957 = vmul.f32 1.0, %v1956
        %v1958 = vrcp.pop %v1863
        %v1959 = vmul.f32 1.0, %v1958
        %v1960 = vrcp.pop %v1864
        %v1961 = vmul.f32 1.0, %v1960
        %v1962 = vrcp.pop %v1865
        %v1963 = vmul.f32 1.0, %v1962
        %v1964 = vrcp.pop %v1866
        %v1965 = vmul.f32 1.0, %v1964
        %v1966 = vrcp.pop %v1867
        %v1967 = vmul.f32 1.0, %v1966
        %v1968 = vrcp.pop %v1868
        %v1969 = vmul.f32 1.0, %v1968
        %v1970 = vrcp.pop %v1869
        %v1971 = vmul.f32 1.0, %v1970
        %v1972 = vrcp.pop %v1870
        %v1973 = vmul.f32 1.0, %v1972
        %v1974 = vrcp.pop %v1871
        %v1975 = vmul.f32 1.0, %v1974
        %v1976 = vrcp.pop %v1872
        %v1977 = vmul.f32 1.0, %v1976
        %v1978 = vrcp.pop %v1873
        %v1979 = vmul.f32 1.0, %v1978
        %v1980 = vrcp.pop %v1874
        %v1981 = vmul.f32 1.0, %v1980
        %v1982 = vrcp.pop %v1875
        %v1983 = vmul.f32 1.0, %v1982
        %v1984 = vrcp.pop %v1876
        %v1985 = vmul.f32 1.0, %v1984
        %v1986 = vrcp.pop %v1877
        %v1987 = vmul.f32 1.0, %v1986
        %v1988 = vrcp.pop %v1878
        %v1989 = vmul.f32 1.0, %v1988
        %v1990 = vrcp.pop %v1879
        %v1991 = vmul.f32 1.0, %v1990
        %v1992 = vrcp.pop %v1880
        %v1993 = vmul.f32 1.0, %v1992
        %v1994 = vrcp.pop %v1881
        %v1995 = vmul.f32 1.0, %v1994
        %v1996 = vrcp.pop %v1882
        %v1997 = vmul.f32 1.0, %v1996
        %v1998 = vrcp.pop %v1883
        %v1999 = vmul.f32 1.0, %v1998
        %v2000 = vrcp.pop %v1884
        %v2001 = vmul.f32 1.0, %v2000
        %v2002 = vrcp.pop %v1885
        %v2003 = vmul.f32 1.0, %v2002
        %v2004 = vrcp.pop %v1886
        %v2005 = vmul.f32 1.0, %v2004
        %v2006 = vrcp.pop %v1887
        %v2007 = vmul.f32 1.0, %v2006
        %v2008 = vrcp.pop %v1888
        %v2009 = vmul.f32 1.0, %v2008
        %v2010 = vrcp.pop %v1889
        %v2011 = vmul.f32 1.0, %v2010
        %v2012 = vrcp.pop %v1890
        %v2013 = vmul.f32 1.0, %v2012
        %v2014 = vrcp.pop %v1891
        %v2015 = vmul.f32 1.0, %v2014
        %v2016 = vrcp.pop %v1892
        %v2017 = vmul.f32 1.0, %v2016
        %v2018 = vrcp.pop %v1893
        %v2019 = vmul.f32 1.0, %v2018
        %v2020 = vrcp.pop %v1894
        %v2021 = vmul.f32 1.0, %v2020
        %v2022 = vrcp.pop %v1895
        %v2023 = vmul.f32 1.0, %v2022
        %v2024 = vpack.c.bf16 %v1913, %v1897
        %v2025 = vpack.c.bf16 %v1915, %v1899
        %v2026 = vpack.c.bf16 %v1917, %v1901
        %v2027 = vpack.c.bf16 %v1919, %v1903
        %v2028 = vpack.c.bf16 %v1921, %v1905
        %v2029 = vpack.c.bf16 %v1923, %v1907
        %v2030 = vpack.c.bf16 %v1925, %v1909
        %v2031 = vpack.c.bf16 %v1927, %v1911
        %v2032 = vpack.c.bf16 %v1945, %v1929
        %v2033 = vpack.c.bf16 %v1947, %v1931
        %v2034 = vpack.c.bf16 %v1949, %v1933
        %v2035 = vpack.c.bf16 %v1951, %v1935
        %v2036 = vpack.c.bf16 %v1953, %v1937
        %v2037 = vpack.c.bf16 %v1955, %v1939
        %v2038 = vpack.c.bf16 %v1957, %v1941
        %v2039 = vpack.c.bf16 %v1959, %v1943
        %v2040 = vpack.c.bf16 %v1977, %v1961
        %v2041 = vpack.c.bf16 %v1979, %v1963
        %v2042 = vpack.c.bf16 %v1981, %v1965
        %v2043 = vpack.c.bf16 %v1983, %v1967
        %v2044 = vpack.c.bf16 %v1985, %v1969
        %v2045 = vpack.c.bf16 %v1987, %v1971
        %v2046 = vpack.c.bf16 %v1989, %v1973
        %v2047 = vpack.c.bf16 %v1991, %v1975
        %v2048 = vpack.c.bf16 %v2009, %v1993
        %v2049 = vpack.c.bf16 %v2011, %v1995
        %v2050 = vpack.c.bf16 %v2013, %v1997
        %v2051 = vpack.c.bf16 %v2015, %v1999
        %v2052 = vpack.c.bf16 %v2017, %v2001
        %v2053 = vpack.c.bf16 %v2019, %v2003
        %v2054 = vpack.c.bf16 %v2021, %v2005
        %v2055 = vpack.c.bf16 %v2023, %v2007
        %v2056 = vld [vmem:[%s5] sm:$0xf]
        %v2057 = vld [vmem:[%s5 + $0x4] sm:$0xf]
        %v2058 = vld [vmem:[%s6] sm:$0xff]
        %v2059 = vld [vmem:[%s6 + $0x8] sm:$0xff]
        %2061 = vset.pattern.permute.xlu0 0
        %2062 = vperm.xlu0 %2061, %v2058
        %v2063 = vpop.permute.xlu0 %2062
        %2066 = vset.pattern.permute.xlu0 0
        %2067 = vperm.xlu0 %2066, %v2059
        %v2068 = vpop.permute.xlu0 %2067
        %v2072 = vunpack.c.l.b16 %v2056
        %v2073 = vunpack.c.l.b16 %v2057
        %v2074 = vpack.c.b16 %v2073, %v2072
        %vm2075 = vcmask 523264
        %v2077 = vsel %vm2075, %v2074, 0
        %2079 = vmatprep.subr.bf16.mxu0 %v2025
        %2080 = vmatpush1.bf16.msra.mxu0 %v2024
        %2081 = vmatprep.subr.bf16.mxu0 %v2033
        %2082 = vmatpush1.bf16.msra.mxu0 %v2032
        %2083 = vmatprep.subr.bf16.mxu0 %v2041
        %2084 = vmatpush1.bf16.msra.mxu0 %v2040
        %2085 = vmatprep.subr.bf16.mxu0 %v2049
        %2086 = vmatpush1.bf16.msra.mxu0 %v2048
        %2087 = vmatprep.subr.bf16.mxu0 0
        %2088 = vmatpush1.bf16.msra.mxu0 0
        %2089 = vmatprep.subr.bf16.mxu0 0
        %2090 = vmatpush1.bf16.msra.mxu0 0
        %2091 = vmatprep.subr.bf16.mxu0 0
        %2092 = vmatpush1.bf16.msra.mxu0 0
        %2093 = vmatprep.subr.bf16.mxu0 0
        %2094 = vmatpush1.bf16.msra.mxu0 0
        %2095 = vmatprep.subr.bf16.mxu0 0
        %2096 = vmatpush1.bf16.msra.mxu0 0
        %2097 = vmatprep.subr.bf16.mxu0 0
        %2098 = vmatpush1.bf16.msra.mxu0 0
        %2099 = vmatprep.subr.bf16.mxu0 0
        %2100 = vmatpush1.bf16.msra.mxu0 0
        %2101 = vmatprep.subr.bf16.mxu0 0
        %2102 = vmatpush1.bf16.msra.mxu0 0
        %2103 = vmatprep.subr.bf16.mxu0 0
        %2104 = vmatpush1.bf16.msra.mxu0 0
        %2105 = vmatprep.subr.bf16.mxu0 0
        %2106 = vmatpush1.bf16.msra.mxu0 0
        %2107 = vmatprep.subr.bf16.mxu0 0
        %2108 = vmatpush1.bf16.msra.mxu0 0
        %2109 = vmatprep.subr.bf16.mxu0 0
        %2110 = vmatpush1.bf16.msra.mxu0 0
        %2111 = vmatprep.mubr.bf16.mxu0 0
        %2112 = vmatmul.mubr.bf16.gmra.mrb[0].mxu0 %v2077
        %v2113 = vpop.f32.mrb[0].mxu0
        %v2114 = vadd.f32 %v2063, %v2113
        %v2115 = vpop.f32.mrb[0].mxu0
        %v2116 = vadd.f32 %v2063, %v2115
        %v2117 = vpop.f32.mrb[0].mxu0
        %v2118 = vadd.f32 %v2068, %v2117
        %v2119 = vpop.f32.mrb[0].mxu0
        %v2120 = vadd.f32 %v2068, %v2119
        %2121 = vdwg.mxu0
        %2122 = vmatprep.subr.bf16.mxu0 %v2027
        %2123 = vmatpush1.bf16.msra.mxu0 %v2026
        %2124 = vmatprep.subr.bf16.mxu0 %v2035
        %2125 = vmatpush1.bf16.msra.mxu0 %v2034
        %2126 = vmatprep.subr.bf16.mxu0 %v2043
        %2127 = vmatpush1.bf16.msra.mxu0 %v2042
        %2128 = vmatprep.subr.bf16.mxu0 %v2051
        %2129 = vmatpush1.bf16.msra.mxu0 %v2050
        %2130 = vmatprep.subr.bf16.mxu0 0
        %2131 = vmatpush1.bf16.msra.mxu0 0
        %2132 = vmatprep.subr.bf16.mxu0 0
        %2133 = vmatpush1.bf16.msra.mxu0 0
        %2134 = vmatprep.subr.bf16.mxu0 0
        %2135 = vmatpush1.bf16.msra.mxu0 0
        %2136 = vmatprep.subr.bf16.mxu0 0
        %2137 = vmatpush1.bf16.msra.mxu0 0
        %2138 = vmatprep.subr.bf16.mxu0 0
        %2139 = vmatpush1.bf16.msra.mxu0 0
        %2140 = vmatprep.subr.bf16.mxu0 0
        %2141 = vmatpush1.bf16.msra.mxu0 0
        %2142 = vmatprep.subr.bf16.mxu0 0
        %2143 = vmatpush1.bf16.msra.mxu0 0
        %2144 = vmatprep.subr.bf16.mxu0 0
        %2145 = vmatpush1.bf16.msra.mxu0 0
        %2146 = vmatprep.subr.bf16.mxu0 0
        %2147 = vmatpush1.bf16.msra.mxu0 0
        %2148 = vmatprep.subr.bf16.mxu0 0
        %2149 = vmatpush1.bf16.msra.mxu0 0
        %2150 = vmatprep.subr.bf16.mxu0 0
        %2151 = vmatpush1.bf16.msra.mxu0 0
        %2152 = vmatprep.subr.bf16.mxu0 0
        %2153 = vmatpush1.bf16.msra.mxu0 0
        %2154 = vmatprep.mubr.bf16.mxu0 0
        %2155 = vmatmul.mubr.bf16.gmra.mrb[0].mxu0 %v2077
        %v2156 = vpop.f32.mrb[0].mxu0
        %v2157 = vadd.f32 %v2063, %v2156
        %v2158 = vpop.f32.mrb[0].mxu0
        %v2159 = vadd.f32 %v2063, %v2158
        %v2160 = vpop.f32.mrb[0].mxu0
        %v2161 = vadd.f32 %v2068, %v2160
        %v2162 = vpop.f32.mrb[0].mxu0
        %v2163 = vadd.f32 %v2068, %v2162
        %2164 = vdwg.mxu0
        %2165 = vmatprep.subr.bf16.mxu0 %v2029
        %2166 = vmatpush1.bf16.msra.mxu0 %v2028
        %2167 = vmatprep.subr.bf16.mxu0 %v2037
        %2168 = vmatpush1.bf16.msra.mxu0 %v2036
        %2169 = vmatprep.subr.bf16.mxu0 %v2045
        %2170 = vmatpush1.bf16.msra.mxu0 %v2044
        %2171 = vmatprep.subr.bf16.mxu0 %v2053
        %2172 = vmatpush1.bf16.msra.mxu0 %v2052
        %2173 = vmatprep.subr.bf16.mxu0 0
        %2174 = vmatpush1.bf16.msra.mxu0 0
        %2175 = vmatprep.subr.bf16.mxu0 0
        %2176 = vmatpush1.bf16.msra.mxu0 0
        %2177 = vmatprep.subr.bf16.mxu0 0
        %2178 = vmatpush1.bf16.msra.mxu0 0
        %2179 = vmatprep.subr.bf16.mxu0 0
        %2180 = vmatpush1.bf16.msra.mxu0 0
        %2181 = vmatprep.subr.bf16.mxu0 0
        %2182 = vmatpush1.bf16.msra.mxu0 0
        %2183 = vmatprep.subr.bf16.mxu0 0
        %2184 = vmatpush1.bf16.msra.mxu0 0
        %2185 = vmatprep.subr.bf16.mxu0 0
        %2186 = vmatpush1.bf16.msra.mxu0 0
        %2187 = vmatprep.subr.bf16.mxu0 0
        %2188 = vmatpush1.bf16.msra.mxu0 0
        %2189 = vmatprep.subr.bf16.mxu0 0
        %2190 = vmatpush1.bf16.msra.mxu0 0
        %2191 = vmatprep.subr.bf16.mxu0 0
        %2192 = vmatpush1.bf16.msra.mxu0 0
        %2193 = vmatprep.subr.bf16.mxu0 0
        %2194 = vmatpush1.bf16.msra.mxu0 0
        %2195 = vmatprep.subr.bf16.mxu0 0
        %2196 = vmatpush1.bf16.msra.mxu0 0
        %2197 = vmatprep.mubr.bf16.mxu0 0
        %2198 = vmatmul.mubr.bf16.gmra.mrb[0].mxu0 %v2077
        %v2199 = vpop.f32.mrb[0].mxu0
        %v2200 = vadd.f32 %v2063, %v2199
        %v2201 = vpop.f32.mrb[0].mxu0
        %v2202 = vadd.f32 %v2063, %v2201
        %v2203 = vpop.f32.mrb[0].mxu0
        %v2204 = vadd.f32 %v2068, %v2203
        %v2205 = vpop.f32.mrb[0].mxu0
        %v2206 = vadd.f32 %v2068, %v2205
        %2207 = vdwg.mxu0
        %2208 = vmatprep.subr.bf16.mxu0 %v2031
        %2209 = vmatpush1.bf16.msra.mxu0 %v2030
        %2210 = vmatprep.subr.bf16.mxu0 %v2039
        %2211 = vmatpush1.bf16.msra.mxu0 %v2038
        %2212 = vmatprep.subr.bf16.mxu0 %v2047
        %2213 = vmatpush1.bf16.msra.mxu0 %v2046
        %2214 = vmatprep.subr.bf16.mxu0 %v2055
        %2215 = vmatpush1.bf16.msra.mxu0 %v2054
        %2216 = vmatprep.subr.bf16.mxu0 0
        %2217 = vmatpush1.bf16.msra.mxu0 0
        %2218 = vmatprep.subr.bf16.mxu0 0
        %2219 = vmatpush1.bf16.msra.mxu0 0
        %2220 = vmatprep.subr.bf16.mxu0 0
        %2221 = vmatpush1.bf16.msra.mxu0 0
        %2222 = vmatprep.subr.bf16.mxu0 0
        %2223 = vmatpush1.bf16.msra.mxu0 0
        %2224 = vmatprep.subr.bf16.mxu0 0
        %2225 = vmatpush1.bf16.msra.mxu0 0
        %2226 = vmatprep.subr.bf16.mxu0 0
        %2227 = vmatpush1.bf16.msra.mxu0 0
        %2228 = vmatprep.subr.bf16.mxu0 0
        %2229 = vmatpush1.bf16.msra.mxu0 0
        %2230 = vmatprep.subr.bf16.mxu0 0
        %2231 = vmatpush1.bf16.msra.mxu0 0
        %2232 = vmatprep.subr.bf16.mxu0 0
        %2233 = vmatpush1.bf16.msra.mxu0 0
        %2234 = vmatprep.subr.bf16.mxu0 0
        %2235 = vmatpush1.bf16.msra.mxu0 0
        %2236 = vmatprep.subr.bf16.mxu0 0
        %2237 = vmatpush1.bf16.msra.mxu0 0
        %2238 = vmatprep.subr.bf16.mxu0 0
        %2239 = vmatpush1.bf16.msra.mxu0 0
        %2240 = vmatprep.mubr.bf16.mxu0 0
        %2241 = vmatmul.mubr.bf16.gmra.mrb[0].mxu0 %v2077
        %v2242 = vpop.f32.mrb[0].mxu0
        %v2243 = vadd.f32 %v2063, %v2242
        %v2244 = vpop.f32.mrb[0].mxu0
        %v2245 = vadd.f32 %v2063, %v2244
        %v2246 = vpop.f32.mrb[0].mxu0
        %v2247 = vadd.f32 %v2068, %v2246
        %v2248 = vpop.f32.mrb[0].mxu0
        %v2249 = vadd.f32 %v2068, %v2248
        %2250 = vdwg.mxu0
        %v2251 = vxor.u32 %v2114, 2147483648
        %v2252 = vxor.u32 %v2116, 2147483648
        %v2253 = vxor.u32 %v2157, 2147483648
        %v2254 = vxor.u32 %v2159, 2147483648
        %v2255 = vxor.u32 %v2200, 2147483648
        %v2256 = vxor.u32 %v2202, 2147483648
        %v2257 = vxor.u32 %v2243, 2147483648
        %v2258 = vxor.u32 %v2245, 2147483648
        %v2259 = vxor.u32 %v2118, 2147483648
        %v2260 = vxor.u32 %v2120, 2147483648
        %v2261 = vxor.u32 %v2161, 2147483648
        %v2262 = vxor.u32 %v2163, 2147483648
        %v2263 = vxor.u32 %v2204, 2147483648
        %v2264 = vxor.u32 %v2206, 2147483648
        %v2265 = vxor.u32 %v2247, 2147483648
        %v2266 = vxor.u32 %v2249, 2147483648
        %v2267 = vmul.f32 %v2251, 1.442695
        %v2268 = vpow.pop %v2267
        %v2269 = vmul.f32 %v2252, 1.442695
        %v2270 = vpow.pop %v2269
        %v2271 = vmul.f32 %v2253, 1.442695
        %v2272 = vpow.pop %v2271
        %v2273 = vmul.f32 %v2254, 1.442695
        %v2274 = vpow.pop %v2273
        %v2275 = vmul.f32 %v2255, 1.442695
        %v2276 = vpow.pop %v2275
        %v2277 = vmul.f32 %v2256, 1.442695
        %v2278 = vpow.pop %v2277
        %v2279 = vmul.f32 %v2257, 1.442695
        %v2280 = vpow.pop %v2279
        %v2281 = vmul.f32 %v2258, 1.442695
        %v2282 = vpow.pop %v2281
        %v2283 = vmul.f32 %v2259, 1.442695
        %v2284 = vpow.pop %v2283
        %v2285 = vmul.f32 %v2260, 1.442695
        %v2286 = vpow.pop %v2285
        %v2287 = vmul.f32 %v2261, 1.442695
        %v2288 = vpow.pop %v2287
        %v2289 = vmul.f32 %v2262, 1.442695
        %v2290 = vpow.pop %v2289
        %v2291 = vmul.f32 %v2263, 1.442695
        %v2292 = vpow.pop %v2291
        %v2293 = vmul.f32 %v2264, 1.442695
        %v2294 = vpow.pop %v2293
        %v2295 = vmul.f32 %v2265, 1.442695
        %v2296 = vpow.pop %v2295
        %v2297 = vmul.f32 %v2266, 1.442695
        %v2298 = vpow.pop %v2297
        %v2299 = vadd.f32 %v2268, 1.0
        %v2300 = vadd.f32 %v2270, 1.0
        %v2301 = vadd.f32 %v2272, 1.0
        %v2302 = vadd.f32 %v2274, 1.0
        %v2303 = vadd.f32 %v2276, 1.0
        %v2304 = vadd.f32 %v2278, 1.0
        %v2305 = vadd.f32 %v2280, 1.0
        %v2306 = vadd.f32 %v2282, 1.0
        %v2307 = vadd.f32 %v2284, 1.0
        %v2308 = vadd.f32 %v2286, 1.0
        %v2309 = vadd.f32 %v2288, 1.0
        %v2310 = vadd.f32 %v2290, 1.0
        %v2311 = vadd.f32 %v2292, 1.0
        %v2312 = vadd.f32 %v2294, 1.0
        %v2313 = vadd.f32 %v2296, 1.0
        %v2314 = vadd.f32 %v2298, 1.0
        %v2315 = vrcp.pop %v2299
        %v2316 = vmul.f32 1.0, %v2315
        %v2317 = vrcp.pop %v2300
        %v2318 = vmul.f32 1.0, %v2317
        %v2319 = vrcp.pop %v2301
        %v2320 = vmul.f32 1.0, %v2319
        %v2321 = vrcp.pop %v2302
        %v2322 = vmul.f32 1.0, %v2321
        %v2323 = vrcp.pop %v2303
        %v2324 = vmul.f32 1.0, %v2323
        %v2325 = vrcp.pop %v2304
        %v2326 = vmul.f32 1.0, %v2325
        %v2327 = vrcp.pop %v2305
        %v2328 = vmul.f32 1.0, %v2327
        %v2329 = vrcp.pop %v2306
        %v2330 = vmul.f32 1.0, %v2329
        %v2331 = vrcp.pop %v2307
        %v2332 = vmul.f32 1.0, %v2331
        %v2333 = vrcp.pop %v2308
        %v2334 = vmul.f32 1.0, %v2333
        %v2335 = vrcp.pop %v2309
        %v2336 = vmul.f32 1.0, %v2335
        %v2337 = vrcp.pop %v2310
        %v2338 = vmul.f32 1.0, %v2337
        %v2339 = vrcp.pop %v2311
        %v2340 = vmul.f32 1.0, %v2339
        %v2341 = vrcp.pop %v2312
        %v2342 = vmul.f32 1.0, %v2341
        %v2343 = vrcp.pop %v2313
        %v2344 = vmul.f32 1.0, %v2343
        %v2345 = vrcp.pop %v2314
        %v2346 = vmul.f32 1.0, %v2345
        %v2347 = vpack.c.bf16 %v2332, %v2316
        %v2348 = vpack.c.bf16 %v2334, %v2318
        %v2349 = vpack.c.bf16 %v2336, %v2320
        %v2350 = vpack.c.bf16 %v2338, %v2322
        %v2351 = vpack.c.bf16 %v2340, %v2324
        %v2352 = vpack.c.bf16 %v2342, %v2326
        %v2353 = vpack.c.bf16 %v2344, %v2328
        %v2354 = vpack.c.bf16 %v2346, %v2330
        %v2355 = vld [vmem:[%s7] sm:$0xf]
        %v2356 = vld [vmem:[%s8] sm:$0xff]
        %2358 = vset.pattern.permute.xlu0 0
        %2359 = vperm.xlu0 %2358, %v2356
        %v2360 = vpop.permute.xlu0 %2359
        %vm2362 = vcmask 130048
        %v2364 = vsel %vm2362, %v2355, 0
        %2366 = vmatprep.subr.bf16.mxu0 %v2348
        %2367 = vmatpush1.bf16.msra.mxu0 %v2347
        %2368 = vmatprep.subr.bf16.mxu0 0
        %2369 = vmatpush1.bf16.msra.mxu0 0
        %2370 = vmatprep.subr.bf16.mxu0 0
        %2371 = vmatpush1.bf16.msra.mxu0 0
        %2372 = vmatprep.subr.bf16.mxu0 0
        %2373 = vmatpush1.bf16.msra.mxu0 0
        %2374 = vmatprep.subr.bf16.mxu0 0
        %2375 = vmatpush1.bf16.msra.mxu0 0
        %2376 = vmatprep.subr.bf16.mxu0 0
        %2377 = vmatpush1.bf16.msra.mxu0 0
        %2378 = vmatprep.subr.bf16.mxu0 0
        %2379 = vmatpush1.bf16.msra.mxu0 0
        %2380 = vmatprep.subr.bf16.mxu0 0
        %2381 = vmatpush1.bf16.msra.mxu0 0
        %2382 = vmatprep.subr.bf16.mxu0 0
        %2383 = vmatpush1.bf16.msra.mxu0 0
        %2384 = vmatprep.subr.bf16.mxu0 0
        %2385 = vmatpush1.bf16.msra.mxu0 0
        %2386 = vmatprep.subr.bf16.mxu0 0
        %2387 = vmatpush1.bf16.msra.mxu0 0
        %2388 = vmatprep.subr.bf16.mxu0 0
        %2389 = vmatpush1.bf16.msra.mxu0 0
        %2390 = vmatprep.subr.bf16.mxu0 0
        %2391 = vmatpush1.bf16.msra.mxu0 0
        %2392 = vmatprep.subr.bf16.mxu0 0
        %2393 = vmatpush1.bf16.msra.mxu0 0
        %2394 = vmatprep.subr.bf16.mxu0 0
        %2395 = vmatpush1.bf16.msra.mxu0 0
        %2396 = vmatprep.subr.bf16.mxu0 0
        %2397 = vmatpush1.bf16.msra.mxu0 0
        %2398 = vmatprep.mubr.bf16.mxu0 0
        %2399 = vmatmul.mubr.bf16.gmra.mrb[0].mxu0 %v2364
        %v2400 = vpop.f32.mrb[0].mxu0
        %v2401 = vadd.f32 %v2360, %v2400
        %v2402 = vpop.f32.mrb[0].mxu0
        %v2403 = vadd.f32 %v2360, %v2402
        %v2404 = vpop.f32.mrb[0].mxu0
        %v2405 = vpop.f32.mrb[0].mxu0
        %2406 = vdwg.mxu0
        %2407 = vmatprep.subr.bf16.mxu0 %v2350
        %2408 = vmatpush1.bf16.msra.mxu0 %v2349
        %2409 = vmatprep.subr.bf16.mxu0 0
        %2410 = vmatpush1.bf16.msra.mxu0 0
        %2411 = vmatprep.subr.bf16.mxu0 0
        %2412 = vmatpush1.bf16.msra.mxu0 0
        %2413 = vmatprep.subr.bf16.mxu0 0
        %2414 = vmatpush1.bf16.msra.mxu0 0
        %2415 = vmatprep.subr.bf16.mxu0 0
        %2416 = vmatpush1.bf16.msra.mxu0 0
        %2417 = vmatprep.subr.bf16.mxu0 0
        %2418 = vmatpush1.bf16.msra.mxu0 0
        %2419 = vmatprep.subr.bf16.mxu0 0
        %2420 = vmatpush1.bf16.msra.mxu0 0
        %2421 = vmatprep.subr.bf16.mxu0 0
        %2422 = vmatpush1.bf16.msra.mxu0 0
        %2423 = vmatprep.subr.bf16.mxu0 0
        %2424 = vmatpush1.bf16.msra.mxu0 0
        %2425 = vmatprep.subr.bf16.mxu0 0
        %2426 = vmatpush1.bf16.msra.mxu0 0
        %2427 = vmatprep.subr.bf16.mxu0 0
        %2428 = vmatpush1.bf16.msra.mxu0 0
        %2429 = vmatprep.subr.bf16.mxu0 0
        %2430 = vmatpush1.bf16.msra.mxu0 0
        %2431 = vmatprep.subr.bf16.mxu0 0
        %2432 = vmatpush1.bf16.msra.mxu0 0
        %2433 = vmatprep.subr.bf16.mxu0 0
        %2434 = vmatpush1.bf16.msra.mxu0 0
        %2435 = vmatprep.subr.bf16.mxu0 0
        %2436 = vmatpush1.bf16.msra.mxu0 0
        %2437 = vmatprep.subr.bf16.mxu0 0
        %2438 = vmatpush1.bf16.msra.mxu0 0
        %2439 = vmatprep.mubr.bf16.mxu0 0
        %2440 = vmatmul.mubr.bf16.gmra.mrb[0].mxu0 %v2364
        %v2441 = vpop.f32.mrb[0].mxu0
        %v2442 = vadd.f32 %v2360, %v2441
        %v2443 = vpop.f32.mrb[0].mxu0
        %v2444 = vadd.f32 %v2360, %v2443
        %v2445 = vpop.f32.mrb[0].mxu0
        %v2446 = vpop.f32.mrb[0].mxu0
        %2447 = vdwg.mxu0
        %2448 = vmatprep.subr.bf16.mxu0 %v2352
        %2449 = vmatpush1.bf16.msra.mxu0 %v2351
        %2450 = vmatprep.subr.bf16.mxu0 0
        %2451 = vmatpush1.bf16.msra.mxu0 0
        %2452 = vmatprep.subr.bf16.mxu0 0
        %2453 = vmatpush1.bf16.msra.mxu0 0
        %2454 = vmatprep.subr.bf16.mxu0 0
        %2455 = vmatpush1.bf16.msra.mxu0 0
        %2456 = vmatprep.subr.bf16.mxu0 0
        %2457 = vmatpush1.bf16.msra.mxu0 0
        %2458 = vmatprep.subr.bf16.mxu0 0
        %2459 = vmatpush1.bf16.msra.mxu0 0
        %2460 = vmatprep.subr.bf16.mxu0 0
        %2461 = vmatpush1.bf16.msra.mxu0 0
        %2462 = vmatprep.subr.bf16.mxu0 0
        %2463 = vmatpush1.bf16.msra.mxu0 0
        %2464 = vmatprep.subr.bf16.mxu0 0
        %2465 = vmatpush1.bf16.msra.mxu0 0
        %2466 = vmatprep.subr.bf16.mxu0 0
        %2467 = vmatpush1.bf16.msra.mxu0 0
        %2468 = vmatprep.subr.bf16.mxu0 0
        %2469 = vmatpush1.bf16.msra.mxu0 0
        %2470 = vmatprep.subr.bf16.mxu0 0
        %2471 = vmatpush1.bf16.msra.mxu0 0
        %2472 = vmatprep.subr.bf16.mxu0 0
        %2473 = vmatpush1.bf16.msra.mxu0 0
        %2474 = vmatprep.subr.bf16.mxu0 0
        %2475 = vmatpush1.bf16.msra.mxu0 0
        %2476 = vmatprep.subr.bf16.mxu0 0
        %2477 = vmatpush1.bf16.msra.mxu0 0
        %2478 = vmatprep.subr.bf16.mxu0 0
        %2479 = vmatpush1.bf16.msra.mxu0 0
        %2480 = vmatprep.mubr.bf16.mxu0 0
        %2481 = vmatmul.mubr.bf16.gmra.mrb[0].mxu0 %v2364
        %v2482 = vpop.f32.mrb[0].mxu0
        %v2483 = vadd.f32 %v2360, %v2482
        %v2484 = vpop.f32.mrb[0].mxu0
        %v2485 = vadd.f32 %v2360, %v2484
        %v2486 = vpop.f32.mrb[0].mxu0
        %v2487 = vpop.f32.mrb[0].mxu0
        %2488 = vdwg.mxu0
        %2489 = vmatprep.subr.bf16.mxu0 %v2354
        %2490 = vmatpush1.bf16.msra.mxu0 %v2353
        %2491 = vmatprep.subr.bf16.mxu0 0
        %2492 = vmatpush1.bf16.msra.mxu0 0
        %2493 = vmatprep.subr.bf16.mxu0 0
        %2494 = vmatpush1.bf16.msra.mxu0 0
        %2495 = vmatprep.subr.bf16.mxu0 0
        %2496 = vmatpush1.bf16.msra.mxu0 0
        %2497 = vmatprep.subr.bf16.mxu0 0
        %2498 = vmatpush1.bf16.msra.mxu0 0
        %2499 = vmatprep.subr.bf16.mxu0 0
        %2500 = vmatpush1.bf16.msra.mxu0 0
        %2501 = vmatprep.subr.bf16.mxu0 0
        %2502 = vmatpush1.bf16.msra.mxu0 0
        %2503 = vmatprep.subr.bf16.mxu0 0
        %2504 = vmatpush1.bf16.msra.mxu0 0
        %2505 = vmatprep.subr.bf16.mxu0 0
        %2506 = vmatpush1.bf16.msra.mxu0 0
        %2507 = vmatprep.subr.bf16.mxu0 0
        %2508 = vmatpush1.bf16.msra.mxu0 0
        %2509 = vmatprep.subr.bf16.mxu0 0
        %2510 = vmatpush1.bf16.msra.mxu0 0
        %2511 = vmatprep.subr.bf16.mxu0 0
        %2512 = vmatpush1.bf16.msra.mxu0 0
        %2513 = vmatprep.subr.bf16.mxu0 0
        %2514 = vmatpush1.bf16.msra.mxu0 0
        %2515 = vmatprep.subr.bf16.mxu0 0
        %2516 = vmatpush1.bf16.msra.mxu0 0
        %2517 = vmatprep.subr.bf16.mxu0 0
        %2518 = vmatpush1.bf16.msra.mxu0 0
        %2519 = vmatprep.subr.bf16.mxu0 0
        %2520 = vmatpush1.bf16.msra.mxu0 0
        %2521 = vmatprep.mubr.bf16.mxu0 0
        %2522 = vmatmul.mubr.bf16.gmra.mrb[0].mxu0 %v2364
        %v2523 = vpop.f32.mrb[0].mxu0
        %v2524 = vadd.f32 %v2360, %v2523
        %v2525 = vpop.f32.mrb[0].mxu0
        %v2526 = vadd.f32 %v2360, %v2525
        %v2527 = vpop.f32.mrb[0].mxu0
        %v2528 = vpop.f32.mrb[0].mxu0
        %2529 = vdwg.mxu0
        %v2530 = vxor.u32 %v2401, 2147483648
        %v2531 = vxor.u32 %v2403, 2147483648
        %v2532 = vxor.u32 %v2442, 2147483648
        %v2533 = vxor.u32 %v2444, 2147483648
        %v2534 = vxor.u32 %v2483, 2147483648
        %v2535 = vxor.u32 %v2485, 2147483648
        %v2536 = vxor.u32 %v2524, 2147483648
        %v2537 = vxor.u32 %v2526, 2147483648
        %v2538 = vmul.f32 %v2530, 1.442695
        %v2539 = vpow.pop %v2538
        %v2540 = vmul.f32 %v2531, 1.442695
        %v2541 = vpow.pop %v2540
        %v2542 = vmul.f32 %v2532, 1.442695
        %v2543 = vpow.pop %v2542
        %v2544 = vmul.f32 %v2533, 1.442695
        %v2545 = vpow.pop %v2544
        %v2546 = vmul.f32 %v2534, 1.442695
        %v2547 = vpow.pop %v2546
        %v2548 = vmul.f32 %v2535, 1.442695
        %v2549 = vpow.pop %v2548
        %v2550 = vmul.f32 %v2536, 1.442695
        %v2551 = vpow.pop %v2550
        %v2552 = vmul.f32 %v2537, 1.442695
        %v2553 = vpow.pop %v2552
        %v2554 = vadd.f32 %v2539, 1.0
        %v2555 = vadd.f32 %v2541, 1.0
        %v2556 = vadd.f32 %v2543, 1.0
        %v2557 = vadd.f32 %v2545, 1.0
        %v2558 = vadd.f32 %v2547, 1.0
        %v2559 = vadd.f32 %v2549, 1.0
        %v2560 = vadd.f32 %v2551, 1.0
        %v2561 = vadd.f32 %v2553, 1.0
        %v2562 = vrcp.pop %v2554
        %v2563 = vmul.f32 1.0, %v2562
        %v2564 = vrcp.pop %v2555
        %v2565 = vmul.f32 1.0, %v2564
        %v2566 = vrcp.pop %v2556
        %v2567 = vmul.f32 1.0, %v2566
        %v2568 = vrcp.pop %v2557
        %v2569 = vmul.f32 1.0, %v2568
        %v2570 = vrcp.pop %v2558
        %v2571 = vmul.f32 1.0, %v2570
        %v2572 = vrcp.pop %v2559
        %v2573 = vmul.f32 1.0, %v2572
        %v2574 = vrcp.pop %v2560
        %v2575 = vmul.f32 1.0, %v2574
        %v2576 = vrcp.pop %v2561
        %v2577 = vmul.f32 1.0, %v2576
        %v2578 = vpack.c.bf16 %v2563, %v2563
        %v2579 = vpack.c.bf16 %v2565, %v2565
        %v2580 = vpack.c.bf16 %v2567, %v2567
        %v2581 = vpack.c.bf16 %v2569, %v2569
        %v2582 = vpack.c.bf16 %v2571, %v2571
        %v2583 = vpack.c.bf16 %v2573, %v2573
        %v2584 = vpack.c.bf16 %v2575, %v2575
        %v2585 = vpack.c.bf16 %v2577, %v2577
        %v2586 = vld [vmem:[%s9] sm:$0x1]
        %v2587 = vld [vmem:[#allocation2] sm:$0x1]
        %2589 = vset.pattern.permute.xlu0 0
        %2590 = vperm.xlu0 %2589, %v2587
        %v2591 = vpop.permute.xlu0 %2590
        %v2593 = vlaneseq
        %v2594 = vshrl.u32 %v2593, 7
        %v2595 = vsub.s32 0, %v2594
        %v2596 = vrot.slane %v2591, %v2595
        %vm2597 = vcmask 64512
        %v2599 = vsel %vm2597, %v2586, 0
        %vm2601 = vcmask 1043456
        %v2603 = vsel %vm2601, %v2578, 0
        %v2606 = vsel %vm2601, %v2579, 0
        %v2609 = vsel %vm2601, %v2580, 0
        %v2612 = vsel %vm2601, %v2581, 0
        %v2615 = vsel %vm2601, %v2582, 0
        %v2618 = vsel %vm2601, %v2583, 0
        %v2621 = vsel %vm2601, %v2584, 0
        %v2624 = vsel %vm2601, %v2585, 0
        %2626 = vmatprep.subr.bf16.mxu0 %v2606
        %2627 = vmatpush1.bf16.msra.mxu0 %v2603
        %2628 = vmatprep.subr.bf16.mxu0 0
        %2629 = vmatpush1.bf16.msra.mxu0 0
        %2630 = vmatprep.subr.bf16.mxu0 0
        %2631 = vmatpush1.bf16.msra.mxu0 0
        %2632 = vmatprep.subr.bf16.mxu0 0
        %2633 = vmatpush1.bf16.msra.mxu0 0
        %2634 = vmatprep.subr.bf16.mxu0 0
        %2635 = vmatpush1.bf16.msra.mxu0 0
        %2636 = vmatprep.subr.bf16.mxu0 0
        %2637 = vmatpush1.bf16.msra.mxu0 0
        %2638 = vmatprep.subr.bf16.mxu0 0
        %2639 = vmatpush1.bf16.msra.mxu0 0
        %2640 = vmatprep.subr.bf16.mxu0 0
        %2641 = vmatpush1.bf16.msra.mxu0 0
        %2642 = vmatprep.subr.bf16.mxu0 0
        %2643 = vmatpush1.bf16.msra.mxu0 0
        %2644 = vmatprep.subr.bf16.mxu0 0
        %2645 = vmatpush1.bf16.msra.mxu0 0
        %2646 = vmatprep.subr.bf16.mxu0 0
        %2647 = vmatpush1.bf16.msra.mxu0 0
        %2648 = vmatprep.subr.bf16.mxu0 0
        %2649 = vmatpush1.bf16.msra.mxu0 0
        %2650 = vmatprep.subr.bf16.mxu0 0
        %2651 = vmatpush1.bf16.msra.mxu0 0
        %2652 = vmatprep.subr.bf16.mxu0 0
        %2653 = vmatpush1.bf16.msra.mxu0 0
        %2654 = vmatprep.subr.bf16.mxu0 0
        %2655 = vmatpush1.bf16.msra.mxu0 0
        %2656 = vmatprep.subr.bf16.mxu0 0
        %2657 = vmatpush1.bf16.msra.mxu0 0
        %2658 = vmatprep.mubr.bf16.mxu0 0
        %2659 = vmatmul.mubr.bf16.gmra.mrb[0].mxu0 %v2599
        %v2660 = vpop.f32.mrb[0].mxu0
        %v2661 = vadd.f32 %v2596, %v2660
        %v2662 = vpop.f32.mrb[0].mxu0
        %v2663 = vadd.f32 %v2596, %v2662
        %v2664 = vpop.f32.mrb[0].mxu0
        %v2665 = vpop.f32.mrb[0].mxu0
        %2666 = vdwg.mxu0
        %2667 = vmatprep.subr.bf16.mxu0 %v2612
        %2668 = vmatpush1.bf16.msra.mxu0 %v2609
        %2669 = vmatprep.subr.bf16.mxu0 0
        %2670 = vmatpush1.bf16.msra.mxu0 0
        %2671 = vmatprep.subr.bf16.mxu0 0
        %2672 = vmatpush1.bf16.msra.mxu0 0
        %2673 = vmatprep.subr.bf16.mxu0 0
        %2674 = vmatpush1.bf16.msra.mxu0 0
        %2675 = vmatprep.subr.bf16.mxu0 0
        %2676 = vmatpush1.bf16.msra.mxu0 0
        %2677 = vmatprep.subr.bf16.mxu0 0
        %2678 = vmatpush1.bf16.msra.mxu0 0
        %2679 = vmatprep.subr.bf16.mxu0 0
        %2680 = vmatpush1.bf16.msra.mxu0 0
        %2681 = vmatprep.subr.bf16.mxu0 0
        %2682 = vmatpush1.bf16.msra.mxu0 0
        %2683 = vmatprep.subr.bf16.mxu0 0
        %2684 = vmatpush1.bf16.msra.mxu0 0
        %2685 = vmatprep.subr.bf16.mxu0 0
        %2686 = vmatpush1.bf16.msra.mxu0 0
        %2687 = vmatprep.subr.bf16.mxu0 0
        %2688 = vmatpush1.bf16.msra.mxu0 0
        %2689 = vmatprep.subr.bf16.mxu0 0
        %2690 = vmatpush1.bf16.msra.mxu0 0
        %2691 = vmatprep.subr.bf16.mxu0 0
        %2692 = vmatpush1.bf16.msra.mxu0 0
        %2693 = vmatprep.subr.bf16.mxu0 0
        %2694 = vmatpush1.bf16.msra.mxu0 0
        %2695 = vmatprep.subr.bf16.mxu0 0
        %2696 = vmatpush1.bf16.msra.mxu0 0
        %2697 = vmatprep.subr.bf16.mxu0 0
        %2698 = vmatpush1.bf16.msra.mxu0 0
        %2699 = vmatprep.mubr.bf16.mxu0 0
        %2700 = vmatmul.mubr.bf16.gmra.mrb[0].mxu0 %v2599
        %v2701 = vpop.f32.mrb[0].mxu0
        %v2702 = vadd.f32 %v2596, %v2701
        %v2703 = vpop.f32.mrb[0].mxu0
        %v2704 = vadd.f32 %v2596, %v2703
        %v2705 = vpop.f32.mrb[0].mxu0
        %v2706 = vpop.f32.mrb[0].mxu0
        %2707 = vdwg.mxu0
        %2708 = vmatprep.subr.bf16.mxu0 %v2618
        %2709 = vmatpush1.bf16.msra.mxu0 %v2615
        %2710 = vmatprep.subr.bf16.mxu0 0
        %2711 = vmatpush1.bf16.msra.mxu0 0
        %2712 = vmatprep.subr.bf16.mxu0 0
        %2713 = vmatpush1.bf16.msra.mxu0 0
        %2714 = vmatprep.subr.bf16.mxu0 0
        %2715 = vmatpush1.bf16.msra.mxu0 0
        %2716 = vmatprep.subr.bf16.mxu0 0
        %2717 = vmatpush1.bf16.msra.mxu0 0
        %2718 = vmatprep.subr.bf16.mxu0 0
        %2719 = vmatpush1.bf16.msra.mxu0 0
        %2720 = vmatprep.subr.bf16.mxu0 0
        %2721 = vmatpush1.bf16.msra.mxu0 0
        %2722 = vmatprep.subr.bf16.mxu0 0
        %2723 = vmatpush1.bf16.msra.mxu0 0
        %2724 = vmatprep.subr.bf16.mxu0 0
        %2725 = vmatpush1.bf16.msra.mxu0 0
        %2726 = vmatprep.subr.bf16.mxu0 0
        %2727 = vmatpush1.bf16.msra.mxu0 0
        %2728 = vmatprep.subr.bf16.mxu0 0
        %2729 = vmatpush1.bf16.msra.mxu0 0
        %2730 = vmatprep.subr.bf16.mxu0 0
        %2731 = vmatpush1.bf16.msra.mxu0 0
        %2732 = vmatprep.subr.bf16.mxu0 0
        %2733 = vmatpush1.bf16.msra.mxu0 0
        %2734 = vmatprep.subr.bf16.mxu0 0
        %2735 = vmatpush1.bf16.msra.mxu0 0
        %2736 = vmatprep.subr.bf16.mxu0 0
        %2737 = vmatpush1.bf16.msra.mxu0 0
        %2738 = vmatprep.subr.bf16.mxu0 0
        %2739 = vmatpush1.bf16.msra.mxu0 0
        %2740 = vmatprep.mubr.bf16.mxu0 0
        %2741 = vmatmul.mubr.bf16.gmra.mrb[0].mxu0 %v2599
        %v2742 = vpop.f32.mrb[0].mxu0
        %v2743 = vadd.f32 %v2596, %v2742
        %v2744 = vpop.f32.mrb[0].mxu0
        %v2745 = vadd.f32 %v2596, %v2744
        %v2746 = vpop.f32.mrb[0].mxu0
        %v2747 = vpop.f32.mrb[0].mxu0
        %2748 = vdwg.mxu0
        %2749 = vmatprep.subr.bf16.mxu0 %v2624
        %2750 = vmatpush1.bf16.msra.mxu0 %v2621
        %2751 = vmatprep.subr.bf16.mxu0 0
        %2752 = vmatpush1.bf16.msra.mxu0 0
        %2753 = vmatprep.subr.bf16.mxu0 0
        %2754 = vmatpush1.bf16.msra.mxu0 0
        %2755 = vmatprep.subr.bf16.mxu0 0
        %2756 = vmatpush1.bf16.msra.mxu0 0
        %2757 = vmatprep.subr.bf16.mxu0 0
        %2758 = vmatpush1.bf16.msra.mxu0 0
        %2759 = vmatprep.subr.bf16.mxu0 0
        %2760 = vmatpush1.bf16.msra.mxu0 0
        %2761 = vmatprep.subr.bf16.mxu0 0
        %2762 = vmatpush1.bf16.msra.mxu0 0
        %2763 = vmatprep.subr.bf16.mxu0 0
        %2764 = vmatpush1.bf16.msra.mxu0 0
        %2765 = vmatprep.subr.bf16.mxu0 0
        %2766 = vmatpush1.bf16.msra.mxu0 0
        %2767 = vmatprep.subr.bf16.mxu0 0
        %2768 = vmatpush1.bf16.msra.mxu0 0
        %2769 = vmatprep.subr.bf16.mxu0 0
        %2770 = vmatpush1.bf16.msra.mxu0 0
        %2771 = vmatprep.subr.bf16.mxu0 0
        %2772 = vmatpush1.bf16.msra.mxu0 0
        %2773 = vmatprep.subr.bf16.mxu0 0
        %2774 = vmatpush1.bf16.msra.mxu0 0
        %2775 = vmatprep.subr.bf16.mxu0 0
        %2776 = vmatpush1.bf16.msra.mxu0 0
        %2777 = vmatprep.subr.bf16.mxu0 0
        %2778 = vmatpush1.bf16.msra.mxu0 0
        %2779 = vmatprep.subr.bf16.mxu0 0
        %2780 = vmatpush1.bf16.msra.mxu0 0
        %2781 = vmatprep.mubr.bf16.mxu0 0
        %2782 = vmatmul.mubr.bf16.gmra.mrb[0].mxu0 %v2599
        %v2783 = vpop.f32.mrb[0].mxu0
        %v2784 = vadd.f32 %v2596, %v2783
        %v2785 = vpop.f32.mrb[0].mxu0
        %v2786 = vadd.f32 %v2596, %v2785
        %v2787 = vpop.f32.mrb[0].mxu0
        %v2788 = vpop.f32.mrb[0].mxu0
        %2789 = vdwg.mxu0
        %v2798 = vcombine.low %v2661, %v2663
        %v2799 = vcombine.low %v2702, %v2704
        %v2800 = vcombine.low %v2743, %v2745
        %v2801 = vcombine.low %v2784, %v2786
        %v2803 = vunpack.c.l.s4 1966171168
        %v2804 = vunpack.c.0.s8 %v2803
        %v2805 = vlaneseq
        %v2806 = vshrl.u32 %v2805, 7
        %v2807 = vsub.s32 %v2804, %v2806
        %v2808 = vrot.slane %v2798, %v2807
        %v2810 = vunpack.c.l.s4 1966171168
        %v2811 = vunpack.c.0.s8 %v2810
        %v2812 = vlaneseq
        %v2813 = vshrl.u32 %v2812, 7
        %v2814 = vsub.s32 %v2811, %v2813
        %v2815 = vrot.slane %v2799, %v2814
        %v2817 = vunpack.c.l.s4 1966171168
        %v2818 = vunpack.c.0.s8 %v2817
        %v2819 = vlaneseq
        %v2820 = vshrl.u32 %v2819, 7
        %v2821 = vsub.s32 %v2818, %v2820
        %v2822 = vrot.slane %v2800, %v2821
        %v2824 = vunpack.c.l.s4 1966171168
        %v2825 = vunpack.c.0.s8 %v2824
        %v2826 = vlaneseq
        %v2827 = vshrl.u32 %v2826, 7
        %v2828 = vsub.s32 %v2825, %v2827
        %v2829 = vrot.slane %v2801, %v2828
        %v2830 = vcombine.low %v2808, %v2815
        %v2831 = vcombine.low %v2822, %v2829
        %v2833 = vunpack.c.l.s4 1966171168
        %v2834 = vunpack.c.0.s8 %v2833
        %v2835 = vlaneseq
        %v2836 = vshrl.u32 %v2835, 7
        %v2837 = vsub.s32 %v2834, %v2836
        %v2838 = vrot.slane %v2830, %v2837
        %v2840 = vunpack.c.l.s4 1966171168
        %v2841 = vunpack.c.0.s8 %v2840
        %v2842 = vlaneseq
        %v2843 = vshrl.u32 %v2842, 7
        %v2844 = vsub.s32 %v2841, %v2843
        %v2845 = vrot.slane %v2831, %v2844
        %v2846 = vcombine.low %v2838, %v2845
        %2848 = vst [vmem:[%s394] sm:$0xff] %v2846
        %s2849 = sand.u32 %s271, 1
        %s2850 = scalar_lea.sflag [#allocation4], %s2849
        %s2851 = sand.u32 %s271, 1
        %s2852 = smul.addr %s2851, 8
        %s2853 = scalar_lea.vmem [#allocation3], %s2852
        // Predicated region
        $region65: #{tpu_custom_call.1} parent=63 // pred_check
          %p2854 = pneg %p281
        $region66: #{tpu_custom_call.1} parent=63 // pred_check_branch
          %2856 = sbr.rel (%p2854) target = $region68
        $region67: #{tpu_custom_call.1} parent=63 // pred_region
          %s2857 = smul.u32 8, %s27
          %s2859 = ssub.s32 128, 128
          %2860 = vsyncadd %s2850, %s2859
          %s2861 = smul.addr %s2857, 16
          %s2862 = scalar_lea.hbm %s11, %s2861
          %s2864 = sshll.u32 %s2853, 4
          %s2865 = int_to_ptr.vmem [resolvable:$true] %s2864
          %2867 = dma.vmem_to_hbm [thread:$0]  %s2865, 128, %s2862, %s2850
        $region68: #{tpu_custom_call.1} parent=63 // pred_fallthru
          _
      $region64: #{tpu_custom_call.1} parent=5 // pred_fallthru
        _
      %p2868 = scmp.le.s32.totalorder 2, %s22
      // Predicated region
      $region69: #{tpu_custom_call.1} parent=5 // pred_check
        %p2869 = pneg %p2868
      $region70: #{tpu_custom_call.1} parent=5 // pred_check_branch
        %2871 = sbr.rel (%p2869) target = $region72
      $region71: #{tpu_custom_call.1} parent=5 // pred_region
        %s2872 = ssub.s32 %s22, 2
        // Predicated region
        $region73: #{tpu_custom_call.1} parent=71 // pred_check
          %p2873 = pneg %p287
        $region74: #{tpu_custom_call.1} parent=71 // pred_check_branch
          %2875 = sbr.rel (%p2873) target = $region76
        $region75: #{tpu_custom_call.1} parent=71 // pred_region
          %s2876 = sand.u32 %s272, 1
          %s2877 = scalar_lea.sflag [#allocation4], %s2876
          %s2878 = sand.u32 %s272, 1
          %s2879 = smul.addr %s2878, 8
          %s2880 = scalar_lea.vmem [#allocation3], %s2879
          %2881 = dma.done %s2877, 128
        $region76: #{tpu_custom_call.1} parent=71 // pred_fallthru
          _
      $region72: #{tpu_custom_call.1} parent=5 // pred_fallthru
        _
    $region6: #{tpu_custom_call.1} parent=1 // loop_footer
      %s26 = sadd.s32 1, %s22
    $region7: #{tpu_custom_call.1} parent=1 // loop_footer_branch
      %21 = sbr.rel target = $region3
    $region8: #{tpu_custom_call.1} parent=1 // loop_exit
      _
    %2882 = vsyncpa [#allocation4], 1
    %s2883 = scalar_lea.sflag [#allocation4], 1
    %2884 = vsyncpa %s2883, 1

</llo_original>
